<compile_context>
chip_gen: v7x
topology: tpu7x:2x2x1
jax: 0.10.0
libtpu: 0.0.40
codegen_flags: <defaults>
</compile_context>

<pallas_src>
import functools

import jax
import jax.numpy as jnp
from jax.experimental import pallas as pl
from jax.experimental.pallas import tpu as pltpu


def bag_kernel(scale_ref, shift_ref, w_ref, mask_ref, p_ref, i_ref, d_ref, o_ref, *, H, W):
    """One batch image per grid step.

    scale_ref, shift_ref : VMEM (Cin, 1)      folded eval-mode BatchNorm scale / shift
    w_ref                : VMEM (9, Cout, Cin) conv weight, one (Cout, Cin) tile per tap
    mask_ref             : VMEM (9, 1, H*W)   per-tap zero-padding border mask
    p_ref, i_ref, d_ref  : VMEM (Cin, H*W)    inputs, spatial dims flattened onto lanes
    o_ref                : VMEM (Cout, H*W)
    """
    Cin, HW = p_ref.shape
    Cout = o_ref.shape[0]

    # --- prologue: sigmoid mix + folded BN + ReLU, vectorized over all channels ---
    e = jax.nn.sigmoid(d_ref[...].astype(jnp.float32))            # EUP
    pv = p_ref[...].astype(jnp.float32)
    iv = i_ref[...].astype(jnp.float32)
    x = iv + e * (pv - iv)                                         # == e*p + (1-e)*i
    y = jnp.maximum(scale_ref[...] * x + shift_ref[...], 0.0)      # (Cin, HW)

    # --- 3x3 conv (pad=1, no bias) as 9 MXU dots over the (Cin, HW) activation slab ---
    acc = jnp.zeros((Cout, HW), jnp.float32)
    t = 0
    for dy in (-1, 0, 1):
        for dx in (-1, 0, 1):
            off = dy * W + dx                      # flat shift for tap (dy, dx)
            if off == 0:
                shifted = y
            else:
                # shifted[c, q] = y[c, q + off] (mod HW), zeroed outside the valid window.
                shifted = pltpu.roll(y, shift=(-off) % HW, axis=1) * mask_ref[t]
            acc = acc + jnp.dot(w_ref[t], shifted, preferred_element_type=jnp.float32)
            t += 1

    o_ref[...] = acc.astype(o_ref.dtype)


def bag_forward(p, i, d, conv_w, gamma, beta, mean, var, *, eps=1e-5):
    """p, i, d: (N, Cin, H, W) float32 (NCHW kept end-to-end).
    conv_w: (Cout, Cin, 3, 3) bias-free conv weight.
    gamma/beta/mean/var: (Cin,) eval-mode BatchNorm parameters (applied before the conv).
    Returns (N, Cout, H, W)."""
    N, Cin, H, W = p.shape
    Cout = conv_w.shape[0]
    HW = H * W

    # Fold eval-mode BatchNorm into per-channel scale/shift.
    scale1 = (gamma / jnp.sqrt(var + eps)).astype(jnp.float32)          # (Cin,)
    shift1 = (beta - mean * scale1).astype(jnp.float32)                 # (Cin,)
    scale = scale1.reshape(Cin, 1)
    shift = shift1.reshape(Cin, 1)

    # Weight as 9 (Cout, Cin) tap tiles, tap order t = (dy+1)*3 + (dx+1).
    w_taps = jnp.transpose(conv_w, (2, 3, 0, 1)).reshape(9, Cout, Cin).astype(jnp.float32)

    # Precomputed per-tap zero-padding border masks on the flattened spatial axis.
    ys = jnp.arange(H).reshape(H, 1)
    xs = jnp.arange(W).reshape(1, W)
    mask_list = []
    for dy in (-1, 0, 1):
        for dx in (-1, 0, 1):
            m = (ys + dy >= 0) & (ys + dy < H) & (xs + dx >= 0) & (xs + dx < W)
            mask_list.append(m.astype(jnp.float32).reshape(1, HW))
    masks = jnp.stack(mask_list, axis=0)                                 # (9, 1, HW)

    # Flatten spatial dims onto the lane axis (free contiguous reshape, no transpose).
    p2 = p.reshape(N, Cin, HW)
    i2 = i.reshape(N, Cin, HW)
    d2 = d.reshape(N, Cin, HW)

    # Explicit VMEM budget: double-buffered inputs/outputs + params, clamped to 64 MiB (v7x).
    elt = 4
    block_bytes = (
        2 * 3 * Cin * HW * elt                     # p/i/d blocks, double-buffered
        + 2 * Cout * HW * elt                      # output block, double-buffered
        + 2 * (2 * Cin + 9 * Cout * Cin + 9 * HW) * elt  # scale/shift/weights/masks
    )
    vmem_bytes = min(max(2 * block_bytes + (4 << 20), 16 << 20), 64 << 20)

    kernel = functools.partial(bag_kernel, H=H, W=W)

    out2 = pl.pallas_call(
        kernel,
        out_shape=jax.ShapeDtypeStruct((N, Cout, HW), p.dtype),
        grid_spec=pltpu.PrefetchScalarGridSpec(
            num_scalar_prefetch=0,
            grid=(N,),
            in_specs=[
                pl.BlockSpec((Cin, 1), lambda n: (0, 0)),            # scale
                pl.BlockSpec((Cin, 1), lambda n: (0, 0)),            # shift
                pl.BlockSpec((9, Cout, Cin), lambda n: (0, 0, 0)),   # weight taps
                pl.BlockSpec((9, 1, HW), lambda n: (0, 0, 0)),       # border masks
                pl.BlockSpec((None, Cin, HW), lambda n: (n, 0, 0)),  # p
                pl.BlockSpec((None, Cin, HW), lambda n: (n, 0, 0)),  # i
                pl.BlockSpec((None, Cin, HW), lambda n: (n, 0, 0)),  # d
            ],
            out_specs=pl.BlockSpec((None, Cout, HW), lambda n: (n, 0, 0)),
        ),
        compiler_params=pltpu.CompilerParams(
            dimension_semantics=("parallel",),
            vmem_limit_bytes=vmem_bytes,
        ),
    )(scale, shift, w_taps, masks, p2, i2, d2)

    return out2.reshape(N, Cout, H, W)


def reference_jax(p, i, d, conv_w, scale, shift):
    """Pure-JAX reference: sigmoid mix -> folded BN -> ReLU -> 3x3 conv (pad=1, no bias)."""
    e = jax.nn.sigmoid(d)
    x = e * p + (1.0 - e) * i
    y = jnp.maximum(scale[None, :, None, None] * x + shift[None, :, None, None], 0.0)
    return jax.lax.conv_general_dilated(
        y, conv_w, window_strides=(1, 1), padding=((1, 1), (1, 1)),
        dimension_numbers=("NCHW", "OIHW", "NCHW"),
        precision=jax.lax.Precision.HIGHEST)


if __name__ == "__main__":
    key = jax.random.PRNGKey(0)
    N, Cin, H, W = 2, 4, 16, 16
    Cout = 4

    keys = jax.random.split(key, 8)
    p = jax.random.normal(keys[0], (N, Cin, H, W), jnp.float32)
    i = jax.random.normal(keys[1], (N, Cin, H, W), jnp.float32)
    d = jax.random.normal(keys[2], (N, Cin, H, W), jnp.float32)

    # Deterministic parameters: conv weight + eval-mode BN stats/affine on the input channels.
    conv_w = 0.1 * jax.random.normal(keys[3], (Cout, Cin, 3, 3), jnp.float32)
    gamma = 1.0 + 0.05 * jax.random.normal(keys[4], (Cin,), jnp.float32)
    beta = 0.02 * jax.random.normal(keys[5], (Cin,), jnp.float32)
    mean = 0.1 * jax.random.normal(keys[6], (Cin,), jnp.float32)
    var = 1.0 + 0.1 * jax.random.uniform(keys[7], (Cin,), jnp.float32)

    out = bag_forward(p, i, d, conv_w, gamma, beta, mean, var)
    out = jax.block_until_ready(out)

    eps = 1e-5
    scale = gamma / jnp.sqrt(var + eps)
    shift = beta - mean * scale
    ref = reference_jax(p, i, d, conv_w, scale, shift)

    assert out.shape == (N, Cout, H, W)
    assert jnp.allclose(out, ref, atol=1e-3, rtol=1e-3), "mismatch vs reference"

    print("KERNEL_OK")
</pallas_src>

<mosaic_0001>
module attributes {stable_mosaic.version = 11 : i64} {
  func.func @bag_kernel(%arg0: i32, %arg1: memref<4x1xf32, #tpu.memory_space<vmem>>, %arg2: memref<4x1xf32, #tpu.memory_space<vmem>>, %arg3: memref<9x4x4xf32, #tpu.memory_space<vmem>>, %arg4: memref<9x1x256xf32, #tpu.memory_space<vmem>>, %arg5: memref<1x4x256xf32, #tpu.memory_space<vmem>>, %arg6: memref<1x4x256xf32, #tpu.memory_space<vmem>>, %arg7: memref<1x4x256xf32, #tpu.memory_space<vmem>>, %arg8: memref<1x4x256xf32, #tpu.memory_space<vmem>>) attributes {dimension_semantics = [#tpu.dimension_semantics<parallel>], iteration_bounds = array<i64: 2>, scalar_prefetch = 0 : i64, scratch_operands = 0 : i64, tpu.core_type = #tpu.core_type<tc>, window_params = [{pipeline_mode = #tpu.pipeline_mode<synchronous>, transform_indices = @transform_0, window_bounds = array<i64: 4, 1>}, {pipeline_mode = #tpu.pipeline_mode<synchronous>, transform_indices = @transform_1, window_bounds = array<i64: 4, 1>}, {pipeline_mode = #tpu.pipeline_mode<synchronous>, transform_indices = @transform_2, window_bounds = array<i64: 9, 4, 4>}, {pipeline_mode = #tpu.pipeline_mode<synchronous>, transform_indices = @transform_3, window_bounds = array<i64: 9, 1, 256>}, {transform_indices = @transform_4, window_bounds = array<i64: 1, 4, 256>}, {transform_indices = @transform_5, window_bounds = array<i64: 1, 4, 256>}, {transform_indices = @transform_6, window_bounds = array<i64: 1, 4, 256>}, {transform_indices = @transform_7, window_bounds = array<i64: 1, 4, 256>}]} {
    %c0 = arith.constant 0 : index
    %c0_0 = arith.constant 0 : index
    %c0_1 = arith.constant 0 : index
    %0 = vector.load %arg7[%c0, %c0_0, %c0_1] : memref<1x4x256xf32, #tpu.memory_space<vmem>>, vector<1x4x256xf32>
    %1 = vector.shape_cast %0 : vector<1x4x256xf32> to vector<4x256xf32>
    %2 = arith.negf %1 : vector<4x256xf32>
    %3 = math.exp %2 : vector<4x256xf32>
    %cst = arith.constant 1.000000e+00 : f32
    %4 = vector.broadcast %cst : f32 to vector<4x256xf32>
    %5 = arith.addf %4, %3 : vector<4x256xf32>
    %6 = arith.divf %4, %5 : vector<4x256xf32>
    %c0_2 = arith.constant 0 : index
    %c0_3 = arith.constant 0 : index
    %c0_4 = arith.constant 0 : index
    %7 = vector.load %arg5[%c0_2, %c0_3, %c0_4] : memref<1x4x256xf32, #tpu.memory_space<vmem>>, vector<1x4x256xf32>
    %8 = vector.shape_cast %7 : vector<1x4x256xf32> to vector<4x256xf32>
    %c0_5 = arith.constant 0 : index
    %c0_6 = arith.constant 0 : index
    %c0_7 = arith.constant 0 : index
    %9 = vector.load %arg6[%c0_5, %c0_6, %c0_7] : memref<1x4x256xf32, #tpu.memory_space<vmem>>, vector<1x4x256xf32>
    %10 = vector.shape_cast %9 : vector<1x4x256xf32> to vector<4x256xf32>
    %11 = arith.subf %8, %10 : vector<4x256xf32>
    %12 = arith.mulf %6, %11 : vector<4x256xf32>
    %13 = arith.addf %10, %12 : vector<4x256xf32>
    %c0_8 = arith.constant 0 : index
    %c0_9 = arith.constant 0 : index
    %14 = vector.load %arg1[%c0_8, %c0_9] : memref<4x1xf32, #tpu.memory_space<vmem>>, vector<4x1xf32>
    %15 = vector.broadcast %14 : vector<4x1xf32> to vector<4x256xf32>
    %16 = arith.mulf %15, %13 : vector<4x256xf32>
    %c0_10 = arith.constant 0 : index
    %c0_11 = arith.constant 0 : index
    %17 = vector.load %arg2[%c0_10, %c0_11] : memref<4x1xf32, #tpu.memory_space<vmem>>, vector<4x1xf32>
    %18 = vector.broadcast %17 : vector<4x1xf32> to vector<4x256xf32>
    %19 = arith.addf %16, %18 : vector<4x256xf32>
    %cst_12 = arith.constant 0.000000e+00 : f32
    %20 = vector.broadcast %cst_12 : f32 to vector<4x256xf32>
    %21 = arith.maximumf %19, %20 : vector<4x256xf32>
    %cst_13 = arith.constant 0.000000e+00 : f32
    %22 = vector.broadcast %cst_13 : f32 to vector<4x256xf32>
    %c17_i32 = arith.constant 17 : i32
    %23 = tpu.dynamic_rotate %21 by %c17_i32 dim 1 : vector<4x256xf32>, i32 -> vector<4x256xf32>
    %c0_14 = arith.constant 0 : index
    %c0_15 = arith.constant 0 : index
    %c0_16 = arith.constant 0 : index
    %24 = vector.load %arg4[%c0_14, %c0_15, %c0_16] : memref<9x1x256xf32, #tpu.memory_space<vmem>>, vector<1x1x256xf32>
    %25 = vector.shape_cast %24 : vector<1x1x256xf32> to vector<1x256xf32>
    %26 = vector.broadcast %25 : vector<1x256xf32> to vector<4x256xf32>
    %27 = arith.mulf %23, %26 : vector<4x256xf32>
    %c0_17 = arith.constant 0 : index
    %c0_18 = arith.constant 0 : index
    %c0_19 = arith.constant 0 : index
    %28 = vector.load %arg3[%c0_17, %c0_18, %c0_19] : memref<9x4x4xf32, #tpu.memory_space<vmem>>, vector<1x4x4xf32>
    %29 = vector.shape_cast %28 : vector<1x4x4xf32> to vector<4x4xf32>
    %cst_20 = arith.constant dense<0.000000e+00> : vector<4x256xf32>
    %30 = tpu.matmul %29, %27, %cst_20 {dimension_numbers = #tpu.dot_dimension_numbers<[1], [0], [0], [1], [0, 0, 1, 1], [], []>} : vector<4x4xf32>, vector<4x256xf32>, vector<4x256xf32> -> vector<4x256xf32>
    %31 = arith.addf %22, %30 : vector<4x256xf32>
    %c16_i32 = arith.constant 16 : i32
    %32 = tpu.dynamic_rotate %21 by %c16_i32 dim 1 : vector<4x256xf32>, i32 -> vector<4x256xf32>
    %c1 = arith.constant 1 : index
    %c0_21 = arith.constant 0 : index
    %c0_22 = arith.constant 0 : index
    %33 = vector.load %arg4[%c1, %c0_21, %c0_22] : memref<9x1x256xf32, #tpu.memory_space<vmem>>, vector<1x1x256xf32>
    %34 = vector.shape_cast %33 : vector<1x1x256xf32> to vector<1x256xf32>
    %35 = vector.broadcast %34 : vector<1x256xf32> to vector<4x256xf32>
    %36 = arith.mulf %32, %35 : vector<4x256xf32>
    %c1_23 = arith.constant 1 : index
    %c0_24 = arith.constant 0 : index
    %c0_25 = arith.constant 0 : index
    %37 = vector.load %arg3[%c1_23, %c0_24, %c0_25] : memref<9x4x4xf32, #tpu.memory_space<vmem>>, vector<1x4x4xf32>
    %38 = vector.shape_cast %37 : vector<1x4x4xf32> to vector<4x4xf32>
    %cst_26 = arith.constant dense<0.000000e+00> : vector<4x256xf32>
    %39 = tpu.matmul %38, %36, %cst_26 {dimension_numbers = #tpu.dot_dimension_numbers<[1], [0], [0], [1], [0, 0, 1, 1], [], []>} : vector<4x4xf32>, vector<4x256xf32>, vector<4x256xf32> -> vector<4x256xf32>
    %40 = arith.addf %31, %39 : vector<4x256xf32>
    %c15_i32 = arith.constant 15 : i32
    %41 = tpu.dynamic_rotate %21 by %c15_i32 dim 1 : vector<4x256xf32>, i32 -> vector<4x256xf32>
    %c2 = arith.constant 2 : index
    %c0_27 = arith.constant 0 : index
    %c0_28 = arith.constant 0 : index
    %42 = vector.load %arg4[%c2, %c0_27, %c0_28] : memref<9x1x256xf32, #tpu.memory_space<vmem>>, vector<1x1x256xf32>
    %43 = vector.shape_cast %42 : vector<1x1x256xf32> to vector<1x256xf32>
    %44 = vector.broadcast %43 : vector<1x256xf32> to vector<4x256xf32>
    %45 = arith.mulf %41, %44 : vector<4x256xf32>
    %c2_29 = arith.constant 2 : index
    %c0_30 = arith.constant 0 : index
    %c0_31 = arith.constant 0 : index
    %46 = vector.load %arg3[%c2_29, %c0_30, %c0_31] : memref<9x4x4xf32, #tpu.memory_space<vmem>>, vector<1x4x4xf32>
    %47 = vector.shape_cast %46 : vector<1x4x4xf32> to vector<4x4xf32>
    %cst_32 = arith.constant dense<0.000000e+00> : vector<4x256xf32>
    %48 = tpu.matmul %47, %45, %cst_32 {dimension_numbers = #tpu.dot_dimension_numbers<[1], [0], [0], [1], [0, 0, 1, 1], [], []>} : vector<4x4xf32>, vector<4x256xf32>, vector<4x256xf32> -> vector<4x256xf32>
    %49 = arith.addf %40, %48 : vector<4x256xf32>
    %c1_i32 = arith.constant 1 : i32
    %50 = tpu.dynamic_rotate %21 by %c1_i32 dim 1 : vector<4x256xf32>, i32 -> vector<4x256xf32>
    %c3 = arith.constant 3 : index
    %c0_33 = arith.constant 0 : index
    %c0_34 = arith.constant 0 : index
    %51 = vector.load %arg4[%c3, %c0_33, %c0_34] : memref<9x1x256xf32, #tpu.memory_space<vmem>>, vector<1x1x256xf32>
    %52 = vector.shape_cast %51 : vector<1x1x256xf32> to vector<1x256xf32>
    %53 = vector.broadcast %52 : vector<1x256xf32> to vector<4x256xf32>
    %54 = arith.mulf %50, %53 : vector<4x256xf32>
    %c3_35 = arith.constant 3 : index
    %c0_36 = arith.constant 0 : index
    %c0_37 = arith.constant 0 : index
    %55 = vector.load %arg3[%c3_35, %c0_36, %c0_37] : memref<9x4x4xf32, #tpu.memory_space<vmem>>, vector<1x4x4xf32>
    %56 = vector.shape_cast %55 : vector<1x4x4xf32> to vector<4x4xf32>
    %cst_38 = arith.constant dense<0.000000e+00> : vector<4x256xf32>
    %57 = tpu.matmul %56, %54, %cst_38 {dimension_numbers = #tpu.dot_dimension_numbers<[1], [0], [0], [1], [0, 0, 1, 1], [], []>} : vector<4x4xf32>, vector<4x256xf32>, vector<4x256xf32> -> vector<4x256xf32>
    %58 = arith.addf %49, %57 : vector<4x256xf32>
    %c4 = arith.constant 4 : index
    %c0_39 = arith.constant 0 : index
    %c0_40 = arith.constant 0 : index
    %59 = vector.load %arg3[%c4, %c0_39, %c0_40] : memref<9x4x4xf32, #tpu.memory_space<vmem>>, vector<1x4x4xf32>
    %60 = vector.shape_cast %59 : vector<1x4x4xf32> to vector<4x4xf32>
    %cst_41 = arith.constant dense<0.000000e+00> : vector<4x256xf32>
    %61 = tpu.matmul %60, %21, %cst_41 {dimension_numbers = #tpu.dot_dimension_numbers<[1], [0], [0], [1], [0, 0, 1, 1], [], []>} : vector<4x4xf32>, vector<4x256xf32>, vector<4x256xf32> -> vector<4x256xf32>
    %62 = arith.addf %58, %61 : vector<4x256xf32>
    %c255_i32 = arith.constant 255 : i32
    %63 = tpu.dynamic_rotate %21 by %c255_i32 dim 1 : vector<4x256xf32>, i32 -> vector<4x256xf32>
    %c5 = arith.constant 5 : index
    %c0_42 = arith.constant 0 : index
    %c0_43 = arith.constant 0 : index
    %64 = vector.load %arg4[%c5, %c0_42, %c0_43] : memref<9x1x256xf32, #tpu.memory_space<vmem>>, vector<1x1x256xf32>
    %65 = vector.shape_cast %64 : vector<1x1x256xf32> to vector<1x256xf32>
    %66 = vector.broadcast %65 : vector<1x256xf32> to vector<4x256xf32>
    %67 = arith.mulf %63, %66 : vector<4x256xf32>
    %c5_44 = arith.constant 5 : index
    %c0_45 = arith.constant 0 : index
    %c0_46 = arith.constant 0 : index
    %68 = vector.load %arg3[%c5_44, %c0_45, %c0_46] : memref<9x4x4xf32, #tpu.memory_space<vmem>>, vector<1x4x4xf32>
    %69 = vector.shape_cast %68 : vector<1x4x4xf32> to vector<4x4xf32>
    %cst_47 = arith.constant dense<0.000000e+00> : vector<4x256xf32>
    %70 = tpu.matmul %69, %67, %cst_47 {dimension_numbers = #tpu.dot_dimension_numbers<[1], [0], [0], [1], [0, 0, 1, 1], [], []>} : vector<4x4xf32>, vector<4x256xf32>, vector<4x256xf32> -> vector<4x256xf32>
    %71 = arith.addf %62, %70 : vector<4x256xf32>
    %c241_i32 = arith.constant 241 : i32
    %72 = tpu.dynamic_rotate %21 by %c241_i32 dim 1 : vector<4x256xf32>, i32 -> vector<4x256xf32>
    %c6 = arith.constant 6 : index
    %c0_48 = arith.constant 0 : index
    %c0_49 = arith.constant 0 : index
    %73 = vector.load %arg4[%c6, %c0_48, %c0_49] : memref<9x1x256xf32, #tpu.memory_space<vmem>>, vector<1x1x256xf32>
    %74 = vector.shape_cast %73 : vector<1x1x256xf32> to vector<1x256xf32>
    %75 = vector.broadcast %74 : vector<1x256xf32> to vector<4x256xf32>
    %76 = arith.mulf %72, %75 : vector<4x256xf32>
    %c6_50 = arith.constant 6 : index
    %c0_51 = arith.constant 0 : index
    %c0_52 = arith.constant 0 : index
    %77 = vector.load %arg3[%c6_50, %c0_51, %c0_52] : memref<9x4x4xf32, #tpu.memory_space<vmem>>, vector<1x4x4xf32>
    %78 = vector.shape_cast %77 : vector<1x4x4xf32> to vector<4x4xf32>
    %cst_53 = arith.constant dense<0.000000e+00> : vector<4x256xf32>
    %79 = tpu.matmul %78, %76, %cst_53 {dimension_numbers = #tpu.dot_dimension_numbers<[1], [0], [0], [1], [0, 0, 1, 1], [], []>} : vector<4x4xf32>, vector<4x256xf32>, vector<4x256xf32> -> vector<4x256xf32>
    %80 = arith.addf %71, %79 : vector<4x256xf32>
    %c240_i32 = arith.constant 240 : i32
    %81 = tpu.dynamic_rotate %21 by %c240_i32 dim 1 : vector<4x256xf32>, i32 -> vector<4x256xf32>
    %c7 = arith.constant 7 : index
    %c0_54 = arith.constant 0 : index
    %c0_55 = arith.constant 0 : index
    %82 = vector.load %arg4[%c7, %c0_54, %c0_55] : memref<9x1x256xf32, #tpu.memory_space<vmem>>, vector<1x1x256xf32>
    %83 = vector.shape_cast %82 : vector<1x1x256xf32> to vector<1x256xf32>
    %84 = vector.broadcast %83 : vector<1x256xf32> to vector<4x256xf32>
    %85 = arith.mulf %81, %84 : vector<4x256xf32>
    %c7_56 = arith.constant 7 : index
    %c0_57 = arith.constant 0 : index
    %c0_58 = arith.constant 0 : index
    %86 = vector.load %arg3[%c7_56, %c0_57, %c0_58] : memref<9x4x4xf32, #tpu.memory_space<vmem>>, vector<1x4x4xf32>
    %87 = vector.shape_cast %86 : vector<1x4x4xf32> to vector<4x4xf32>
    %cst_59 = arith.constant dense<0.000000e+00> : vector<4x256xf32>
    %88 = tpu.matmul %87, %85, %cst_59 {dimension_numbers = #tpu.dot_dimension_numbers<[1], [0], [0], [1], [0, 0, 1, 1], [], []>} : vector<4x4xf32>, vector<4x256xf32>, vector<4x256xf32> -> vector<4x256xf32>
    %89 = arith.addf %80, %88 : vector<4x256xf32>
    %c239_i32 = arith.constant 239 : i32
    %90 = tpu.dynamic_rotate %21 by %c239_i32 dim 1 : vector<4x256xf32>, i32 -> vector<4x256xf32>
    %c8 = arith.constant 8 : index
    %c0_60 = arith.constant 0 : index
    %c0_61 = arith.constant 0 : index
    %91 = vector.load %arg4[%c8, %c0_60, %c0_61] : memref<9x1x256xf32, #tpu.memory_space<vmem>>, vector<1x1x256xf32>
    %92 = vector.shape_cast %91 : vector<1x1x256xf32> to vector<1x256xf32>
    %93 = vector.broadcast %92 : vector<1x256xf32> to vector<4x256xf32>
    %94 = arith.mulf %90, %93 : vector<4x256xf32>
    %c8_62 = arith.constant 8 : index
    %c0_63 = arith.constant 0 : index
    %c0_64 = arith.constant 0 : index
    %95 = vector.load %arg3[%c8_62, %c0_63, %c0_64] : memref<9x4x4xf32, #tpu.memory_space<vmem>>, vector<1x4x4xf32>
    %96 = vector.shape_cast %95 : vector<1x4x4xf32> to vector<4x4xf32>
    %cst_65 = arith.constant dense<0.000000e+00> : vector<4x256xf32>
    %97 = tpu.matmul %96, %94, %cst_65 {dimension_numbers = #tpu.dot_dimension_numbers<[1], [0], [0], [1], [0, 0, 1, 1], [], []>} : vector<4x4xf32>, vector<4x256xf32>, vector<4x256xf32> -> vector<4x256xf32>
    %98 = arith.addf %89, %97 : vector<4x256xf32>
    %c0_66 = arith.constant 0 : index
    %c0_67 = arith.constant 0 : index
    %c0_68 = arith.constant 0 : index
    %99 = vector.load %arg8[%c0_66, %c0_67, %c0_68] : memref<1x4x256xf32, #tpu.memory_space<vmem>>, vector<1x4x256xf32>
    %100 = vector.shape_cast %99 : vector<1x4x256xf32> to vector<4x256xf32>
    %101 = vector.shape_cast %98 : vector<4x256xf32> to vector<1x4x256xf32>
    tpu.vector_store %arg8[%c0_66, %c0_67, %c0_68], %101 {strides = array<i32>} : memref<1x4x256xf32, #tpu.memory_space<vmem>>, vector<1x4x256xf32>,
    return
  }
  func.func @transform_0(%arg0: i32) -> (i32, i32) {
    %c0_i32 = arith.constant 0 : i32
    %c0_i32_0 = arith.constant 0 : i32
    %c0_i32_1 = arith.constant 0 : i32
    return %c0_i32, %c0_i32_0 : i32, i32
  }
  func.func @transform_1(%arg0: i32) -> (i32, i32) {
    %c0_i32 = arith.constant 0 : i32
    %c0_i32_0 = arith.constant 0 : i32
    %c0_i32_1 = arith.constant 0 : i32
    return %c0_i32, %c0_i32_0 : i32, i32
  }
  func.func @transform_2(%arg0: i32) -> (i32, i32, i32) {
    %c0_i32 = arith.constant 0 : i32
    %c0_i32_0 = arith.constant 0 : i32
    %c0_i32_1 = arith.constant 0 : i32
    %c0_i32_2 = arith.constant 0 : i32
    return %c0_i32, %c0_i32_0, %c0_i32_1 : i32, i32, i32
  }
  func.func @transform_3(%arg0: i32) -> (i32, i32, i32) {
    %c0_i32 = arith.constant 0 : i32
    %c0_i32_0 = arith.constant 0 : i32
    %c0_i32_1 = arith.constant 0 : i32
    %c0_i32_2 = arith.constant 0 : i32
    return %c0_i32, %c0_i32_0, %c0_i32_1 : i32, i32, i32
  }
  func.func @transform_4(%arg0: i32) -> (i32, i32, i32) {
    %c0_i32 = arith.constant 0 : i32
    %c0_i32_0 = arith.constant 0 : i32
    %c0_i32_1 = arith.constant 0 : i32
    return %arg0, %c0_i32, %c0_i32_0 : i32, i32, i32
  }
  func.func @transform_5(%arg0: i32) -> (i32, i32, i32) {
    %c0_i32 = arith.constant 0 : i32
    %c0_i32_0 = arith.constant 0 : i32
    %c0_i32_1 = arith.constant 0 : i32
    return %arg0, %c0_i32, %c0_i32_0 : i32, i32, i32
  }
  func.func @transform_6(%arg0: i32) -> (i32, i32, i32) {
    %c0_i32 = arith.constant 0 : i32
    %c0_i32_0 = arith.constant 0 : i32
    %c0_i32_1 = arith.constant 0 : i32
    return %arg0, %c0_i32, %c0_i32_0 : i32, i32, i32
  }
  func.func @transform_7(%arg0: i32) -> (i32, i32, i32) {
    %c0_i32 = arith.constant 0 : i32
    %c0_i32_0 = arith.constant 0 : i32
    %c0_i32_1 = arith.constant 0 : i32
    return %arg0, %c0_i32, %c0_i32_0 : i32, i32, i32
  }
}

</mosaic_0001>

<llo_original>
// kernel: tpu_custom_call.1
$region0: #{tpu_custom_call.1}
  #allocation0 [shape = 'u32[]', space=smem, size = 0x4, offset = 0x4, fixed_abs, tag = 'smem constant byte address 0x4 - core index']
  #allocation1 [shape = 'u32[144,128]{1,0:T(1,128)}', space=vmem, size = 0x12000, scoped, tag = 'internal scratch']
  %s0 = inlined_call_operand.vmem [shape: f32[4,1], index: 0, kind: input, shape index: {}]
  %s1 = inlined_call_operand.vmem [shape: f32[4,1], index: 1, kind: input, shape index: {}]
  %s2 = inlined_call_operand.vmem [shape: f32[9,4,4], index: 2, kind: input, shape index: {}]
  %s3 = inlined_call_operand.vmem [shape: f32[9,1,256], index: 3, kind: input, shape index: {}]
  %s4 = inlined_call_operand.vmem [shape: f32[2,4,256], index: 4, kind: input, shape index: {}]
  %s5 = inlined_call_operand.vmem [shape: f32[2,4,256], index: 5, kind: input, shape index: {}]
  %s6 = inlined_call_operand.vmem [shape: f32[2,4,256], index: 6, kind: input, shape index: {}]
  %s7 = inlined_call_operand.hbm [shape: f32[2,4,256], index: 7, kind: output, shape index: {}]
  %s8 = sld [smem:[#allocation0]]
  $region61: #{tpu_custom_call.1} parent=0
    _
  %s10 = ssub.s32 1, %s8
  %s11 = scalar_select 0, %s10, %s8
  $region1: #{tpu_custom_call.1} parent=0
    #allocation2 [shape = 'u8[8192]{0}', space=vmem, size = 0x2000, scoped, tag = 'output window, operand 0']
    #allocation3 [shape = 's32[2]{0}', space=sflag, size = 0x8, scoped, tag = 'scoped memory for tpu_custom_call.1']
    %12 = vsyncpa [#allocation3], 0
    %s13 = scalar_lea.sflag [#allocation3], 1
    %14 = vsyncpa %s13, 0
    loop: start=0, step=1, limit=4
    $region2: #{tpu_custom_call.1} parent=1 // loop_pre_header
      _
    $region3: #{tpu_custom_call.1} parent=1 // loop_header
      %s16 = sphi 0, %s20
      %p17 = scmp.ge.s32.totalorder %s16, 4
      %s24 = sphi 0, %s24
      %s26 = sphi 0, %s24
      %s27 = sphi 0, %s26
      %s41 = sphi 0, %s27
      %s45 = sphi 0, %s45
      %s47 = sphi 0, %s45
      %s48 = sphi 0, %s47
      %s62 = sphi 0, %s48
      %s66 = sphi 0, %s66
      %s68 = sphi 0, %s66
      %s69 = sphi 0, %s68
      %s83 = sphi 0, %s69
      %s87 = sphi 0, %s87
      %s89 = sphi 0, %s87
      %s90 = sphi 0, %s89
      %s104 = sphi 0, %s90
      %s110 = sphi 0, %s112
      %s113 = sphi 0, %s110
      %s114 = sphi 0, %s113
      %s130 = sphi 0, %s114
      %s136 = sphi 0, %s138
      %s139 = sphi 0, %s136
      %s140 = sphi 0, %s139
      %s156 = sphi 0, %s140
      %s162 = sphi 0, %s164
      %s165 = sphi 0, %s162
      %s166 = sphi 0, %s165
      %s182 = sphi 0, %s166
      %s188 = sphi 0, %s190
      %s191 = sphi 0, %s188
      %s192 = sphi 0, %s191
      %s208 = sphi 0, %s192
    $region4: #{tpu_custom_call.1} parent=1 // loop_header_branch
      %19 = sbr.rel (%p17) target = $region8
    $region5: #{tpu_custom_call.1} parent=1 // loop_body
      %s21 = ssub.s32 %s16, 1
      %s22 = ssub.s32 %s16, 2
      %s23 = sadd.s32 %s16, 1
      %s25 = sadd.s32 %s24, 1
      %p28 = scmp.eq.s32.totalorder %s16, 1
      %p29 = scmp.ne.s32.totalorder %s24, %s26
      %p30 = scmp.eq.s32.totalorder %s16, 0
      %p31 = por %p29, %p30
      %p32 = scmp.ne.s32.totalorder %s24, %s26
      %p33 = scmp.eq.s32.totalorder %s21, 1
      %p34 = por %p32, %p33
      %p35 = scmp.ne.s32.totalorder %s26, %s27
      %p36 = scmp.eq.s32.totalorder %s21, 0
      %p37 = por %p35, %p36
      %p38 = scmp.ne.s32.totalorder %s26, %s27
      %p39 = scmp.eq.s32.totalorder %s22, 1
      %p40 = por %p38, %p39
      %p42 = scmp.ne.s32.totalorder %s27, %s41
      %p43 = scmp.eq.s32.totalorder %s22, 0
      %p44 = por %p42, %p43
      %s46 = sadd.s32 %s45, 1
      %p49 = scmp.eq.s32.totalorder %s16, 1
      %p50 = scmp.ne.s32.totalorder %s45, %s47
      %p51 = scmp.eq.s32.totalorder %s16, 0
      %p52 = por %p50, %p51
      %p53 = scmp.ne.s32.totalorder %s45, %s47
      %p54 = scmp.eq.s32.totalorder %s21, 1
      %p55 = por %p53, %p54
      %p56 = scmp.ne.s32.totalorder %s47, %s48
      %p57 = scmp.eq.s32.totalorder %s21, 0
      %p58 = por %p56, %p57
      %p59 = scmp.ne.s32.totalorder %s47, %s48
      %p60 = scmp.eq.s32.totalorder %s22, 1
      %p61 = por %p59, %p60
      %p63 = scmp.ne.s32.totalorder %s48, %s62
      %p64 = scmp.eq.s32.totalorder %s22, 0
      %p65 = por %p63, %p64
      %s67 = sadd.s32 %s66, 1
      %p70 = scmp.eq.s32.totalorder %s16, 1
      %p71 = scmp.ne.s32.totalorder %s66, %s68
      %p72 = scmp.eq.s32.totalorder %s16, 0
      %p73 = por %p71, %p72
      %p74 = scmp.ne.s32.totalorder %s66, %s68
      %p75 = scmp.eq.s32.totalorder %s21, 1
      %p76 = por %p74, %p75
      %p77 = scmp.ne.s32.totalorder %s68, %s69
      %p78 = scmp.eq.s32.totalorder %s21, 0
      %p79 = por %p77, %p78
      %p80 = scmp.ne.s32.totalorder %s68, %s69
      %p81 = scmp.eq.s32.totalorder %s22, 1
      %p82 = por %p80, %p81
      %p84 = scmp.ne.s32.totalorder %s69, %s83
      %p85 = scmp.eq.s32.totalorder %s22, 0
      %p86 = por %p84, %p85
      %s88 = sadd.s32 %s87, 1
      %p91 = scmp.eq.s32.totalorder %s16, 1
      %p92 = scmp.ne.s32.totalorder %s87, %s89
      %p93 = scmp.eq.s32.totalorder %s16, 0
      %p94 = por %p92, %p93
      %p95 = scmp.ne.s32.totalorder %s87, %s89
      %p96 = scmp.eq.s32.totalorder %s21, 1
      %p97 = por %p95, %p96
      %p98 = scmp.ne.s32.totalorder %s89, %s90
      %p99 = scmp.eq.s32.totalorder %s21, 0
      %p100 = por %p98, %p99
      %p101 = scmp.ne.s32.totalorder %s89, %s90
      %p102 = scmp.eq.s32.totalorder %s22, 1
      %p103 = por %p101, %p102
      %p105 = scmp.ne.s32.totalorder %s90, %s104
      %p106 = scmp.eq.s32.totalorder %s22, 0
      %p107 = por %p105, %p106
      %s108 = ssub.s32 %s16, %s23
      %p109 = scmp.eq.s32.totalorder %s108, 0
      %s111 = sadd.s32 %s110, 1
      %s112 = scalar_select %p109, %s110, %s111
      %p115 = pneg %p109
      %p116 = scmp.eq.s32.totalorder %s16, 1
      %p117 = por %p115, %p116
      %p118 = scmp.ne.s32.totalorder %s110, %s113
      %p119 = scmp.eq.s32.totalorder %s16, 0
      %p120 = por %p118, %p119
      %p121 = scmp.ne.s32.totalorder %s110, %s113
      %p122 = scmp.eq.s32.totalorder %s21, 1
      %p123 = por %p121, %p122
      %p124 = scmp.ne.s32.totalorder %s113, %s114
      %p125 = scmp.eq.s32.totalorder %s21, 0
      %p126 = por %p124, %p125
      %p127 = scmp.ne.s32.totalorder %s113, %s114
      %p128 = scmp.eq.s32.totalorder %s22, 1
      %p129 = por %p127, %p128
      %p131 = scmp.ne.s32.totalorder %s114, %s130
      %p132 = scmp.eq.s32.totalorder %s22, 0
      %p133 = por %p131, %p132
      %s134 = ssub.s32 %s16, %s23
      %p135 = scmp.eq.s32.totalorder %s134, 0
      %s137 = sadd.s32 %s136, 1
      %s138 = scalar_select %p135, %s136, %s137
      %p141 = pneg %p135
      %p142 = scmp.eq.s32.totalorder %s16, 1
      %p143 = por %p141, %p142
      %p144 = scmp.ne.s32.totalorder %s136, %s139
      %p145 = scmp.eq.s32.totalorder %s16, 0
      %p146 = por %p144, %p145
      %p147 = scmp.ne.s32.totalorder %s136, %s139
      %p148 = scmp.eq.s32.totalorder %s21, 1
      %p149 = por %p147, %p148
      %p150 = scmp.ne.s32.totalorder %s139, %s140
      %p151 = scmp.eq.s32.totalorder %s21, 0
      %p152 = por %p150, %p151
      %p153 = scmp.ne.s32.totalorder %s139, %s140
      %p154 = scmp.eq.s32.totalorder %s22, 1
      %p155 = por %p153, %p154
      %p157 = scmp.ne.s32.totalorder %s140, %s156
      %p158 = scmp.eq.s32.totalorder %s22, 0
      %p159 = por %p157, %p158
      %s160 = ssub.s32 %s16, %s23
      %p161 = scmp.eq.s32.totalorder %s160, 0
      %s163 = sadd.s32 %s162, 1
      %s164 = scalar_select %p161, %s162, %s163
      %p167 = pneg %p161
      %p168 = scmp.eq.s32.totalorder %s16, 1
      %p169 = por %p167, %p168
      %p170 = scmp.ne.s32.totalorder %s162, %s165
      %p171 = scmp.eq.s32.totalorder %s16, 0
      %p172 = por %p170, %p171
      %p173 = scmp.ne.s32.totalorder %s162, %s165
      %p174 = scmp.eq.s32.totalorder %s21, 1
      %p175 = por %p173, %p174
      %p176 = scmp.ne.s32.totalorder %s165, %s166
      %p177 = scmp.eq.s32.totalorder %s21, 0
      %p178 = por %p176, %p177
      %p179 = scmp.ne.s32.totalorder %s165, %s166
      %p180 = scmp.eq.s32.totalorder %s22, 1
      %p181 = por %p179, %p180
      %p183 = scmp.ne.s32.totalorder %s166, %s182
      %p184 = scmp.eq.s32.totalorder %s22, 0
      %p185 = por %p183, %p184
      %s186 = ssub.s32 %s16, %s23
      %p187 = scmp.eq.s32.totalorder %s186, 0
      %s189 = sadd.s32 %s188, 1
      %s190 = scalar_select %p187, %s188, %s189
      %p193 = pneg %p187
      %p194 = scmp.eq.s32.totalorder %s16, 1
      %p195 = por %p193, %p194
      %p196 = scmp.ne.s32.totalorder %s188, %s191
      %p197 = scmp.eq.s32.totalorder %s16, 0
      %p198 = por %p196, %p197
      %p199 = scmp.ne.s32.totalorder %s188, %s191
      %p200 = scmp.eq.s32.totalorder %s21, 1
      %p201 = por %p199, %p200
      %p202 = scmp.ne.s32.totalorder %s191, %s192
      %p203 = scmp.eq.s32.totalorder %s21, 0
      %p204 = por %p202, %p203
      %p205 = scmp.ne.s32.totalorder %s191, %s192
      %p206 = scmp.eq.s32.totalorder %s22, 1
      %p207 = por %p205, %p206
      %p209 = scmp.ne.s32.totalorder %s192, %s208
      %p210 = scmp.eq.s32.totalorder %s22, 0
      %p211 = por %p209, %p210
      %p212 = scmp.le.s32.totalorder 1, %s16
      %p213 = scmp.lt.s32.totalorder %s16, 3
      %p214 = pnand %p212, %p213
      %p215 = pneg %p214
      // Predicated region
      $region9: #{tpu_custom_call.1} parent=5 // pred_check
        _
      $region10: #{tpu_custom_call.1} parent=5 // pred_check_branch
        %217 = sbr.rel (%p214) target = $region12
      $region11: #{tpu_custom_call.1} parent=5 // pred_region
        %s218 = ssub.s32 %s16, 1
        // Predicated region
        $region13: #{tpu_custom_call.1} parent=11 // pred_check
          %p219 = pneg %p37
        $region14: #{tpu_custom_call.1} parent=11 // pred_check_branch
          %221 = sbr.rel (%p219) target = $region16
        $region15: #{tpu_custom_call.1} parent=11 // pred_region
          _
        $region16: #{tpu_custom_call.1} parent=11 // pred_fallthru
          _
        // Predicated region
        $region17: #{tpu_custom_call.1} parent=11 // pred_check
          %p222 = pneg %p58
        $region18: #{tpu_custom_call.1} parent=11 // pred_check_branch
          %224 = sbr.rel (%p222) target = $region20
        $region19: #{tpu_custom_call.1} parent=11 // pred_region
          _
        $region20: #{tpu_custom_call.1} parent=11 // pred_fallthru
          _
        // Predicated region
        $region21: #{tpu_custom_call.1} parent=11 // pred_check
          %p225 = pneg %p79
        $region22: #{tpu_custom_call.1} parent=11 // pred_check_branch
          %227 = sbr.rel (%p225) target = $region24
        $region23: #{tpu_custom_call.1} parent=11 // pred_region
          _
        $region24: #{tpu_custom_call.1} parent=11 // pred_fallthru
          _
        // Predicated region
        $region25: #{tpu_custom_call.1} parent=11 // pred_check
          %p228 = pneg %p100
        $region26: #{tpu_custom_call.1} parent=11 // pred_check_branch
          %230 = sbr.rel (%p228) target = $region28
        $region27: #{tpu_custom_call.1} parent=11 // pred_region
          _
        $region28: #{tpu_custom_call.1} parent=11 // pred_fallthru
          _
      $region12: #{tpu_custom_call.1} parent=5 // pred_fallthru
        _
      %p231 = scmp.lt.s32.totalorder %s16, 2
      // Predicated region
      $region29: #{tpu_custom_call.1} parent=5 // pred_check
        %p232 = pneg %p231
      $region30: #{tpu_custom_call.1} parent=5 // pred_check_branch
        %234 = sbr.rel (%p232) target = $region32
      $region31: #{tpu_custom_call.1} parent=5 // pred_region
        // Predicated region
        $region33: #{tpu_custom_call.1} parent=31 // pred_check
          %p235 = pneg %p120
        $region34: #{tpu_custom_call.1} parent=31 // pred_check_branch
          %237 = sbr.rel (%p235) target = $region36
        $region35: #{tpu_custom_call.1} parent=31 // pred_region
          %p238 = scmp.lt.s32.totalorder %s16, 1
          %s239 = scalar_select %p238, %s16, 1
          %s240 = smul.addr %s239, 2
          %s241 = smul.addr %s240, 4
          %s242 = scalar_lea.vmem %s4, %s241
        $region36: #{tpu_custom_call.1} parent=31 // pred_fallthru
          _
        // Predicated region
        $region37: #{tpu_custom_call.1} parent=31 // pred_check
          %p243 = pneg %p146
        $region38: #{tpu_custom_call.1} parent=31 // pred_check_branch
          %245 = sbr.rel (%p243) target = $region40
        $region39: #{tpu_custom_call.1} parent=31 // pred_region
          %p246 = scmp.lt.s32.totalorder %s16, 1
          %s247 = scalar_select %p246, %s16, 1
          %s248 = smul.addr %s247, 2
          %s249 = smul.addr %s248, 4
          %s250 = scalar_lea.vmem %s5, %s249
        $region40: #{tpu_custom_call.1} parent=31 // pred_fallthru
          _
        // Predicated region
        $region41: #{tpu_custom_call.1} parent=31 // pred_check
          %p251 = pneg %p172
        $region42: #{tpu_custom_call.1} parent=31 // pred_check_branch
          %253 = sbr.rel (%p251) target = $region44
        $region43: #{tpu_custom_call.1} parent=31 // pred_region
          %p254 = scmp.lt.s32.totalorder %s16, 1
          %s255 = scalar_select %p254, %s16, 1
          %s256 = smul.addr %s255, 2
          %s257 = smul.addr %s256, 4
          %s258 = scalar_lea.vmem %s6, %s257
        $region44: #{tpu_custom_call.1} parent=31 // pred_fallthru
          _
      $region32: #{tpu_custom_call.1} parent=5 // pred_fallthru
        _
      %p259 = scmp.le.s32.totalorder 1, %s16
      %p260 = scmp.lt.s32.totalorder %s16, 3
      %p261 = pnand %p259, %p260
      %p262 = pneg %p261
      // Predicated region
      $region45: #{tpu_custom_call.1} parent=5 // pred_check
        _
      $region46: #{tpu_custom_call.1} parent=5 // pred_check_branch
        %264 = sbr.rel (%p261) target = $region48
      $region47: #{tpu_custom_call.1} parent=5 // pred_region
        %s265 = ssub.s32 %s16, 1
        %p266 = pneg %p37
        %p267 = pneg %p34
        %p268 = pneg %p58
        %p269 = pneg %p55
        %p270 = pneg %p79
        %p271 = pneg %p76
        %p272 = pneg %p100
        %p273 = pneg %p97
        %p274 = scmp.lt.s32.totalorder %s21, 1
        %s275 = scalar_select %p274, %s21, 1
        %s276 = smul.addr %s275, 2
        %s277 = smul.addr %s276, 4
        %s278 = scalar_lea.vmem %s4, %s277
        %p279 = pneg %p126
        %p280 = pneg %p123
        %p281 = scmp.lt.s32.totalorder %s21, 1
        %s282 = scalar_select %p281, %s21, 1
        %s283 = smul.addr %s282, 2
        %s284 = smul.addr %s283, 4
        %s285 = scalar_lea.vmem %s5, %s284
        %p286 = pneg %p152
        %p287 = pneg %p149
        %p288 = scmp.lt.s32.totalorder %s21, 1
        %s289 = scalar_select %p288, %s21, 1
        %s290 = smul.addr %s289, 2
        %s291 = smul.addr %s290, 4
        %s292 = scalar_lea.vmem %s6, %s291
        %p293 = pneg %p178
        %p294 = pneg %p175
        %p295 = pneg %p204
        %p296 = pneg %p201
        %s297 = sand.u32 %s191, 1
        %s298 = scalar_lea.sflag [#allocation3], %s297
        %s299 = sand.u32 %s191, 1
        %s300 = smul.addr %s299, 8
        %s301 = scalar_lea.vmem [#allocation2], %s300
        %p302 = scmp.lt.s32.totalorder %s21, 1
        %s303 = scalar_select %p302, %s21, 1
        %s304 = smul.addr %s303, 2
        %s305 = smul.addr %s304, 4
        %s306 = scalar_lea.vmem %s4, %s305
        %p307 = scmp.lt.s32.totalorder %s21, 1
        %s308 = scalar_select %p307, %s21, 1
        %s309 = smul.addr %s308, 2
        %s310 = smul.addr %s309, 4
        %s311 = scalar_lea.vmem %s5, %s310
        %p312 = scmp.lt.s32.totalorder %s21, 1
        %s313 = scalar_select %p312, %s21, 1
        %s314 = smul.addr %s313, 2
        %s315 = smul.addr %s314, 4
        %s316 = scalar_lea.vmem %s6, %s315
        %v317 = vld [vmem:[%s316] sm:$0xff]
        %v318 = vxor.u32 %v317, 2147483648
        %v319 = vmul.f32 %v318, 1.442695
        %v320 = vpow.pop %v319
        %v321 = vadd.f32 %v320, 1.0
        %v322 = vrcp.pop %v321
        %v323 = vmul.f32 1.0, %v322
        %v324 = vld [vmem:[%s306] sm:$0xff]
        %v325 = vld [vmem:[%s311] sm:$0xff]
        %v326 = vsub.f32 %v324, %v325
        %v327 = vmul.f32 %v323, %v326
        %v328 = vadd.f32 %v325, %v327
        %v329 = vld [vmem:[%s0] sm:$0xf]
        %331 = vset.pattern.permute.xlu0 0
        %332 = vperm.xlu0 %331, %v329
        %v333 = vpop.permute.xlu0 %332
        %v336 = vcombine.high %v328, %v328
        %v338 = vmul.f32 %v333, %v328
        %v339 = vmul.f32 %v333, %v336
        %v340 = vld [vmem:[%s1] sm:$0xf]
        %342 = vset.pattern.permute.xlu0 0
        %343 = vperm.xlu0 %342, %v340
        %v344 = vpop.permute.xlu0 %343
        %v346 = vadd.f32 %v338, %v344
        %v347 = vadd.f32 %v339, %v344
        %v348 = vmax.f32 %v346, 0.0
        %v349 = vmax.f32 %v347, 0.0
        %350 = vrot.lane.b32.xlu0 %v348, 17
        %v351 = vpop.permute.xlu0 %350
        %352 = vrot.lane.b32.xlu0 %v349, 17
        %v353 = vpop.permute.xlu0 %352
        %v354 = vlaneseq
        %v355 = vand.u32 %v354, 127
        %vm356 = vcmp.lt.s32.totalorder %v355, 17
        %v357 = vsel %vm356, %v351, %v353
        %v358 = vsel %vm356, %v353, %v351
        %v359 = vld [vmem:[%s3] sm:$0x3]
        %v361 = vlaneseq
        %v362 = vshrl.u32 %v361, 7
        %v363 = vsub.s32 0, %v362
        %v364 = vrot.slane %v359, %v363
        %v365 = vlaneseq
        %v366 = vshrl.u32 %v365, 7
        %v367 = vsub.s32 1, %v366
        %v368 = vrot.slane %v359, %v367
        %v371 = vmul.f32 %v358, %v364
        %v372 = vmul.f32 %v357, %v368
        %v373 = vld [vmem:[%s2] sm:$0xf]
        %374 = vrot.lane.b32.xlu0 %v348, 16
        %v375 = vpop.permute.xlu0 %374
        %376 = vrot.lane.b32.xlu0 %v349, 16
        %v377 = vpop.permute.xlu0 %376
        %vm378 = vcmp.lt.s32.totalorder %v355, 16
        %v379 = vsel %vm378, %v375, %v377
        %v380 = vsel %vm378, %v377, %v375
        %s381 = scalar_lea.vmem %s3, 2
        %v382 = vld [vmem:[%s381] sm:$0x3]
        %v384 = vlaneseq
        %v385 = vshrl.u32 %v384, 7
        %v386 = vsub.s32 0, %v385
        %v387 = vrot.slane %v382, %v386
        %v388 = vlaneseq
        %v389 = vshrl.u32 %v388, 7
        %v390 = vsub.s32 1, %v389
        %v391 = vrot.slane %v382, %v390
        %v394 = vmul.f32 %v380, %v387
        %v395 = vmul.f32 %v379, %v391
        %s396 = scalar_lea.vmem %s2, 4
        %v397 = vld [vmem:[%s396] sm:$0xf]
        %vm398 = vcmask 31744
        %v400 = vsel %vm398, %v397, 0
        %vm402 = vcmask 1043456
        %v404 = vsel %vm402, %v394, 0
        %v407 = vsel %vm402, %v395, 0
        %409 = vmatprep.subr.mxu0 %v407
        %410 = vmatpush1.msra.mxu0 %v404
        %411 = vmatprep.subr.mxu0 0.0
        %412 = vmatpush1.msra.mxu0 0.0
        %413 = vmatprep.subr.mxu0 0.0
        %414 = vmatpush1.msra.mxu0 0.0
        %415 = vmatprep.subr.mxu0 0.0
        %416 = vmatpush1.msra.mxu0 0.0
        %417 = vmatprep.subr.mxu0 0.0
        %418 = vmatpush1.msra.mxu0 0.0
        %419 = vmatprep.subr.mxu0 0.0
        %420 = vmatpush1.msra.mxu0 0.0
        %421 = vmatprep.subr.mxu0 0.0
        %422 = vmatpush1.msra.mxu0 0.0
        %423 = vmatprep.subr.mxu0 0.0
        %424 = vmatpush1.msra.mxu0 0.0
        %425 = vmatprep.subr.mxu0 0.0
        %426 = vmatpush1.msra.mxu0 0.0
        %427 = vmatprep.subr.mxu0 0.0
        %428 = vmatpush1.msra.mxu0 0.0
        %429 = vmatprep.subr.mxu0 0.0
        %430 = vmatpush1.msra.mxu0 0.0
        %431 = vmatprep.subr.mxu0 0.0
        %432 = vmatpush1.msra.mxu0 0.0
        %433 = vmatprep.subr.mxu0 0.0
        %434 = vmatpush1.msra.mxu0 0.0
        %435 = vmatprep.subr.mxu0 0.0
        %436 = vmatpush1.msra.mxu0 0.0
        %437 = vmatprep.subr.mxu0 0.0
        %438 = vmatpush1.msra.mxu0 0.0
        %439 = vmatprep.subr.mxu0 0.0
        %440 = vmatpush1.msra.mxu0 0.0
        %441 = vmatprep.subr.mxu0 0.0
        %442 = vmatpush1.msra.mxu0 0.0
        %443 = vmatprep.subr.mxu0 0.0
        %444 = vmatpush1.msra.mxu0 0.0
        %445 = vmatprep.subr.mxu0 0.0
        %446 = vmatpush1.msra.mxu0 0.0
        %447 = vmatprep.subr.mxu0 0.0
        %448 = vmatpush1.msra.mxu0 0.0
        %449 = vmatprep.subr.mxu0 0.0
        %450 = vmatpush1.msra.mxu0 0.0
        %451 = vmatprep.subr.mxu0 0.0
        %452 = vmatpush1.msra.mxu0 0.0
        %453 = vmatprep.subr.mxu0 0.0
        %454 = vmatpush1.msra.mxu0 0.0
        %455 = vmatprep.subr.mxu0 0.0
        %456 = vmatpush1.msra.mxu0 0.0
        %457 = vmatprep.subr.mxu0 0.0
        %458 = vmatpush1.msra.mxu0 0.0
        %459 = vmatprep.subr.mxu0 0.0
        %460 = vmatpush1.msra.mxu0 0.0
        %461 = vmatprep.subr.mxu0 0.0
        %462 = vmatpush1.msra.mxu0 0.0
        %463 = vmatprep.subr.mxu0 0.0
        %464 = vmatpush1.msra.mxu0 0.0
        %465 = vmatprep.subr.mxu0 0.0
        %466 = vmatpush1.msra.mxu0 0.0
        %467 = vmatprep.subr.mxu0 0.0
        %468 = vmatpush1.msra.mxu0 0.0
        %469 = vmatprep.subr.mxu0 0.0
        %470 = vmatpush1.msra.mxu0 0.0
        %471 = vmatprep.subr.mxu0 0.0
        %472 = vmatpush1.msra.mxu0 0.0
        %473 = vmatprep.mubr.f32.mxu0 0.0
        %474 = vmatmul.mubr.f32.gmra.mrb[0].mxu0 %v400
        %v475 = vpop.f32.mrb[0].mxu0
        %v476 = vadd.f32 0.0, %v475
        %v477 = vpop.f32.mrb[0].mxu0
        %v478 = vadd.f32 0.0, %v477
        %479 = vdwg.mxu0
        %v481 = vsel %vm398, %v373, 0
        %v484 = vsel %vm402, %v371, 0
        %v487 = vsel %vm402, %v372, 0
        %489 = vmatprep.subr.mxu0 %v487
        %490 = vmatpush1.msra.mxu0 %v484
        %491 = vmatprep.subr.mxu0 0.0
        %492 = vmatpush1.msra.mxu0 0.0
        %493 = vmatprep.subr.mxu0 0.0
        %494 = vmatpush1.msra.mxu0 0.0
        %495 = vmatprep.subr.mxu0 0.0
        %496 = vmatpush1.msra.mxu0 0.0
        %497 = vmatprep.subr.mxu0 0.0
        %498 = vmatpush1.msra.mxu0 0.0
        %499 = vmatprep.subr.mxu0 0.0
        %500 = vmatpush1.msra.mxu0 0.0
        %501 = vmatprep.subr.mxu0 0.0
        %502 = vmatpush1.msra.mxu0 0.0
        %503 = vmatprep.subr.mxu0 0.0
        %504 = vmatpush1.msra.mxu0 0.0
        %505 = vmatprep.subr.mxu0 0.0
        %506 = vmatpush1.msra.mxu0 0.0
        %507 = vmatprep.subr.mxu0 0.0
        %508 = vmatpush1.msra.mxu0 0.0
        %509 = vmatprep.subr.mxu0 0.0
        %510 = vmatpush1.msra.mxu0 0.0
        %511 = vmatprep.subr.mxu0 0.0
        %512 = vmatpush1.msra.mxu0 0.0
        %513 = vmatprep.subr.mxu0 0.0
        %514 = vmatpush1.msra.mxu0 0.0
        %515 = vmatprep.subr.mxu0 0.0
        %516 = vmatpush1.msra.mxu0 0.0
        %517 = vmatprep.subr.mxu0 0.0
        %518 = vmatpush1.msra.mxu0 0.0
        %519 = vmatprep.subr.mxu0 0.0
        %520 = vmatpush1.msra.mxu0 0.0
        %521 = vmatprep.subr.mxu0 0.0
        %522 = vmatpush1.msra.mxu0 0.0
        %523 = vmatprep.subr.mxu0 0.0
        %524 = vmatpush1.msra.mxu0 0.0
        %525 = vmatprep.subr.mxu0 0.0
        %526 = vmatpush1.msra.mxu0 0.0
        %527 = vmatprep.subr.mxu0 0.0
        %528 = vmatpush1.msra.mxu0 0.0
        %529 = vmatprep.subr.mxu0 0.0
        %530 = vmatpush1.msra.mxu0 0.0
        %531 = vmatprep.subr.mxu0 0.0
        %532 = vmatpush1.msra.mxu0 0.0
        %533 = vmatprep.subr.mxu0 0.0
        %534 = vmatpush1.msra.mxu0 0.0
        %535 = vmatprep.subr.mxu0 0.0
        %536 = vmatpush1.msra.mxu0 0.0
        %537 = vmatprep.subr.mxu0 0.0
        %538 = vmatpush1.msra.mxu0 0.0
        %539 = vmatprep.subr.mxu0 0.0
        %540 = vmatpush1.msra.mxu0 0.0
        %541 = vmatprep.subr.mxu0 0.0
        %542 = vmatpush1.msra.mxu0 0.0
        %543 = vmatprep.subr.mxu0 0.0
        %544 = vmatpush1.msra.mxu0 0.0
        %545 = vmatprep.subr.mxu0 0.0
        %546 = vmatpush1.msra.mxu0 0.0
        %547 = vmatprep.subr.mxu0 0.0
        %548 = vmatpush1.msra.mxu0 0.0
        %549 = vmatprep.subr.mxu0 0.0
        %550 = vmatpush1.msra.mxu0 0.0
        %551 = vmatprep.subr.mxu0 0.0
        %552 = vmatpush1.msra.mxu0 0.0
        %553 = vmatprep.mubr.f32.mxu0 0.0
        %554 = vmatmul.mubr.f32.gmra.mrb[0].mxu0 %v481
        %v555 = vpop.f32.mrb[0].mxu0
        %v556 = vadd.f32 %v476, %v555
        %v557 = vpop.f32.mrb[0].mxu0
        %v558 = vadd.f32 %v478, %v557
        %559 = vdwg.mxu0
        %560 = vrot.lane.b32.xlu0 %v348, 15
        %v561 = vpop.permute.xlu0 %560
        %562 = vrot.lane.b32.xlu0 %v349, 15
        %v563 = vpop.permute.xlu0 %562
        %vm564 = vcmp.lt.s32.totalorder %v355, 15
        %v565 = vsel %vm564, %v561, %v563
        %v566 = vsel %vm564, %v563, %v561
        %s567 = scalar_lea.vmem %s3, 4
        %v568 = vld [vmem:[%s567] sm:$0x3]
        %v570 = vlaneseq
        %v571 = vshrl.u32 %v570, 7
        %v572 = vsub.s32 0, %v571
        %v573 = vrot.slane %v568, %v572
        %v574 = vlaneseq
        %v575 = vshrl.u32 %v574, 7
        %v576 = vsub.s32 1, %v575
        %v577 = vrot.slane %v568, %v576
        %v580 = vmul.f32 %v566, %v573
        %v581 = vmul.f32 %v565, %v577
        %s582 = scalar_lea.vmem %s2, 8
        %v583 = vld [vmem:[%s582] sm:$0xf]
        %v585 = vsel %vm398, %v583, 0
        %v588 = vsel %vm402, %v580, 0
        %v591 = vsel %vm402, %v581, 0
        %593 = vmatprep.subr.mxu0 %v591
        %594 = vmatpush1.msra.mxu0 %v588
        %595 = vmatprep.subr.mxu0 0.0
        %596 = vmatpush1.msra.mxu0 0.0
        %597 = vmatprep.subr.mxu0 0.0
        %598 = vmatpush1.msra.mxu0 0.0
        %599 = vmatprep.subr.mxu0 0.0
        %600 = vmatpush1.msra.mxu0 0.0
        %601 = vmatprep.subr.mxu0 0.0
        %602 = vmatpush1.msra.mxu0 0.0
        %603 = vmatprep.subr.mxu0 0.0
        %604 = vmatpush1.msra.mxu0 0.0
        %605 = vmatprep.subr.mxu0 0.0
        %606 = vmatpush1.msra.mxu0 0.0
        %607 = vmatprep.subr.mxu0 0.0
        %608 = vmatpush1.msra.mxu0 0.0
        %609 = vmatprep.subr.mxu0 0.0
        %610 = vmatpush1.msra.mxu0 0.0
        %611 = vmatprep.subr.mxu0 0.0
        %612 = vmatpush1.msra.mxu0 0.0
        %613 = vmatprep.subr.mxu0 0.0
        %614 = vmatpush1.msra.mxu0 0.0
        %615 = vmatprep.subr.mxu0 0.0
        %616 = vmatpush1.msra.mxu0 0.0
        %617 = vmatprep.subr.mxu0 0.0
        %618 = vmatpush1.msra.mxu0 0.0
        %619 = vmatprep.subr.mxu0 0.0
        %620 = vmatpush1.msra.mxu0 0.0
        %621 = vmatprep.subr.mxu0 0.0
        %622 = vmatpush1.msra.mxu0 0.0
        %623 = vmatprep.subr.mxu0 0.0
        %624 = vmatpush1.msra.mxu0 0.0
        %625 = vmatprep.subr.mxu0 0.0
        %626 = vmatpush1.msra.mxu0 0.0
        %627 = vmatprep.subr.mxu0 0.0
        %628 = vmatpush1.msra.mxu0 0.0
        %629 = vmatprep.subr.mxu0 0.0
        %630 = vmatpush1.msra.mxu0 0.0
        %631 = vmatprep.subr.mxu0 0.0
        %632 = vmatpush1.msra.mxu0 0.0
        %633 = vmatprep.subr.mxu0 0.0
        %634 = vmatpush1.msra.mxu0 0.0
        %635 = vmatprep.subr.mxu0 0.0
        %636 = vmatpush1.msra.mxu0 0.0
        %637 = vmatprep.subr.mxu0 0.0
        %638 = vmatpush1.msra.mxu0 0.0
        %639 = vmatprep.subr.mxu0 0.0
        %640 = vmatpush1.msra.mxu0 0.0
        %641 = vmatprep.subr.mxu0 0.0
        %642 = vmatpush1.msra.mxu0 0.0
        %643 = vmatprep.subr.mxu0 0.0
        %644 = vmatpush1.msra.mxu0 0.0
        %645 = vmatprep.subr.mxu0 0.0
        %646 = vmatpush1.msra.mxu0 0.0
        %647 = vmatprep.subr.mxu0 0.0
        %648 = vmatpush1.msra.mxu0 0.0
        %649 = vmatprep.subr.mxu0 0.0
        %650 = vmatpush1.msra.mxu0 0.0
        %651 = vmatprep.subr.mxu0 0.0
        %652 = vmatpush1.msra.mxu0 0.0
        %653 = vmatprep.subr.mxu0 0.0
        %654 = vmatpush1.msra.mxu0 0.0
        %655 = vmatprep.subr.mxu0 0.0
        %656 = vmatpush1.msra.mxu0 0.0
        %657 = vmatprep.mubr.f32.mxu0 0.0
        %658 = vmatmul.mubr.f32.gmra.mrb[0].mxu0 %v585
        %v659 = vpop.f32.mrb[0].mxu0
        %v660 = vadd.f32 0.0, %v659
        %v661 = vpop.f32.mrb[0].mxu0
        %v662 = vadd.f32 0.0, %v661
        %663 = vdwg.mxu0
        %v664 = vadd.f32 %v556, %v660
        %v665 = vadd.f32 %v558, %v662
        %666 = vrot.lane.b32.xlu0 %v348, 1
        %v667 = vpop.permute.xlu0 %666
        %668 = vrot.lane.b32.xlu0 %v349, 1
        %v669 = vpop.permute.xlu0 %668
        %vm670 = vcmp.lt.s32.totalorder %v355, 1
        %v671 = vsel %vm670, %v667, %v669
        %v672 = vsel %vm670, %v669, %v667
        %s673 = scalar_lea.vmem %s3, 6
        %v674 = vld [vmem:[%s673] sm:$0x3]
        %v676 = vlaneseq
        %v677 = vshrl.u32 %v676, 7
        %v678 = vsub.s32 0, %v677
        %v679 = vrot.slane %v674, %v678
        %v680 = vlaneseq
        %v681 = vshrl.u32 %v680, 7
        %v682 = vsub.s32 1, %v681
        %v683 = vrot.slane %v674, %v682
        %v686 = vmul.f32 %v672, %v679
        %v687 = vmul.f32 %v671, %v683
        %s688 = scalar_lea.vmem %s2, 12
        %v689 = vld [vmem:[%s688] sm:$0xf]
        %v691 = vsel %vm398, %v689, 0
        %v694 = vsel %vm402, %v686, 0
        %v697 = vsel %vm402, %v687, 0
        %699 = vmatprep.subr.mxu0 %v697
        %700 = vmatpush1.msra.mxu0 %v694
        %701 = vmatprep.subr.mxu0 0.0
        %702 = vmatpush1.msra.mxu0 0.0
        %703 = vmatprep.subr.mxu0 0.0
        %704 = vmatpush1.msra.mxu0 0.0
        %705 = vmatprep.subr.mxu0 0.0
        %706 = vmatpush1.msra.mxu0 0.0
        %707 = vmatprep.subr.mxu0 0.0
        %708 = vmatpush1.msra.mxu0 0.0
        %709 = vmatprep.subr.mxu0 0.0
        %710 = vmatpush1.msra.mxu0 0.0
        %711 = vmatprep.subr.mxu0 0.0
        %712 = vmatpush1.msra.mxu0 0.0
        %713 = vmatprep.subr.mxu0 0.0
        %714 = vmatpush1.msra.mxu0 0.0
        %715 = vmatprep.subr.mxu0 0.0
        %716 = vmatpush1.msra.mxu0 0.0
        %717 = vmatprep.subr.mxu0 0.0
        %718 = vmatpush1.msra.mxu0 0.0
        %719 = vmatprep.subr.mxu0 0.0
        %720 = vmatpush1.msra.mxu0 0.0
        %721 = vmatprep.subr.mxu0 0.0
        %722 = vmatpush1.msra.mxu0 0.0
        %723 = vmatprep.subr.mxu0 0.0
        %724 = vmatpush1.msra.mxu0 0.0
        %725 = vmatprep.subr.mxu0 0.0
        %726 = vmatpush1.msra.mxu0 0.0
        %727 = vmatprep.subr.mxu0 0.0
        %728 = vmatpush1.msra.mxu0 0.0
        %729 = vmatprep.subr.mxu0 0.0
        %730 = vmatpush1.msra.mxu0 0.0
        %731 = vmatprep.subr.mxu0 0.0
        %732 = vmatpush1.msra.mxu0 0.0
        %733 = vmatprep.subr.mxu0 0.0
        %734 = vmatpush1.msra.mxu0 0.0
        %735 = vmatprep.subr.mxu0 0.0
        %736 = vmatpush1.msra.mxu0 0.0
        %737 = vmatprep.subr.mxu0 0.0
        %738 = vmatpush1.msra.mxu0 0.0
        %739 = vmatprep.subr.mxu0 0.0
        %740 = vmatpush1.msra.mxu0 0.0
        %741 = vmatprep.subr.mxu0 0.0
        %742 = vmatpush1.msra.mxu0 0.0
        %743 = vmatprep.subr.mxu0 0.0
        %744 = vmatpush1.msra.mxu0 0.0
        %745 = vmatprep.subr.mxu0 0.0
        %746 = vmatpush1.msra.mxu0 0.0
        %747 = vmatprep.subr.mxu0 0.0
        %748 = vmatpush1.msra.mxu0 0.0
        %749 = vmatprep.subr.mxu0 0.0
        %750 = vmatpush1.msra.mxu0 0.0
        %751 = vmatprep.subr.mxu0 0.0
        %752 = vmatpush1.msra.mxu0 0.0
        %753 = vmatprep.subr.mxu0 0.0
        %754 = vmatpush1.msra.mxu0 0.0
        %755 = vmatprep.subr.mxu0 0.0
        %756 = vmatpush1.msra.mxu0 0.0
        %757 = vmatprep.subr.mxu0 0.0
        %758 = vmatpush1.msra.mxu0 0.0
        %759 = vmatprep.subr.mxu0 0.0
        %760 = vmatpush1.msra.mxu0 0.0
        %761 = vmatprep.subr.mxu0 0.0
        %762 = vmatpush1.msra.mxu0 0.0
        %763 = vmatprep.mubr.f32.mxu0 0.0
        %764 = vmatmul.mubr.f32.gmra.mrb[0].mxu0 %v691
        %v765 = vpop.f32.mrb[0].mxu0
        %v766 = vadd.f32 0.0, %v765
        %v767 = vpop.f32.mrb[0].mxu0
        %v768 = vadd.f32 0.0, %v767
        %769 = vdwg.mxu0
        %v770 = vadd.f32 %v664, %v766
        %v771 = vadd.f32 %v665, %v768
        %s772 = scalar_lea.vmem %s2, 16
        %v773 = vld [vmem:[%s772] sm:$0xf]
        %v775 = vsel %vm398, %v773, 0
        %v778 = vsel %vm402, %v348, 0
        %v781 = vsel %vm402, %v349, 0
        %783 = vmatprep.subr.mxu0 %v781
        %784 = vmatpush1.msra.mxu0 %v778
        %785 = vmatprep.subr.mxu0 0.0
        %786 = vmatpush1.msra.mxu0 0.0
        %787 = vmatprep.subr.mxu0 0.0
        %788 = vmatpush1.msra.mxu0 0.0
        %789 = vmatprep.subr.mxu0 0.0
        %790 = vmatpush1.msra.mxu0 0.0
        %791 = vmatprep.subr.mxu0 0.0
        %792 = vmatpush1.msra.mxu0 0.0
        %793 = vmatprep.subr.mxu0 0.0
        %794 = vmatpush1.msra.mxu0 0.0
        %795 = vmatprep.subr.mxu0 0.0
        %796 = vmatpush1.msra.mxu0 0.0
        %797 = vmatprep.subr.mxu0 0.0
        %798 = vmatpush1.msra.mxu0 0.0
        %799 = vmatprep.subr.mxu0 0.0
        %800 = vmatpush1.msra.mxu0 0.0
        %801 = vmatprep.subr.mxu0 0.0
        %802 = vmatpush1.msra.mxu0 0.0
        %803 = vmatprep.subr.mxu0 0.0
        %804 = vmatpush1.msra.mxu0 0.0
        %805 = vmatprep.subr.mxu0 0.0
        %806 = vmatpush1.msra.mxu0 0.0
        %807 = vmatprep.subr.mxu0 0.0
        %808 = vmatpush1.msra.mxu0 0.0
        %809 = vmatprep.subr.mxu0 0.0
        %810 = vmatpush1.msra.mxu0 0.0
        %811 = vmatprep.subr.mxu0 0.0
        %812 = vmatpush1.msra.mxu0 0.0
        %813 = vmatprep.subr.mxu0 0.0
        %814 = vmatpush1.msra.mxu0 0.0
        %815 = vmatprep.subr.mxu0 0.0
        %816 = vmatpush1.msra.mxu0 0.0
        %817 = vmatprep.subr.mxu0 0.0
        %818 = vmatpush1.msra.mxu0 0.0
        %819 = vmatprep.subr.mxu0 0.0
        %820 = vmatpush1.msra.mxu0 0.0
        %821 = vmatprep.subr.mxu0 0.0
        %822 = vmatpush1.msra.mxu0 0.0
        %823 = vmatprep.subr.mxu0 0.0
        %824 = vmatpush1.msra.mxu0 0.0
        %825 = vmatprep.subr.mxu0 0.0
        %826 = vmatpush1.msra.mxu0 0.0
        %827 = vmatprep.subr.mxu0 0.0
        %828 = vmatpush1.msra.mxu0 0.0
        %829 = vmatprep.subr.mxu0 0.0
        %830 = vmatpush1.msra.mxu0 0.0
        %831 = vmatprep.subr.mxu0 0.0
        %832 = vmatpush1.msra.mxu0 0.0
        %833 = vmatprep.subr.mxu0 0.0
        %834 = vmatpush1.msra.mxu0 0.0
        %835 = vmatprep.subr.mxu0 0.0
        %836 = vmatpush1.msra.mxu0 0.0
        %837 = vmatprep.subr.mxu0 0.0
        %838 = vmatpush1.msra.mxu0 0.0
        %839 = vmatprep.subr.mxu0 0.0
        %840 = vmatpush1.msra.mxu0 0.0
        %841 = vmatprep.subr.mxu0 0.0
        %842 = vmatpush1.msra.mxu0 0.0
        %843 = vmatprep.subr.mxu0 0.0
        %844 = vmatpush1.msra.mxu0 0.0
        %845 = vmatprep.subr.mxu0 0.0
        %846 = vmatpush1.msra.mxu0 0.0
        %847 = vmatprep.mubr.f32.mxu0 0.0
        %848 = vmatmul.mubr.f32.gmra.mrb[0].mxu0 %v775
        %v849 = vpop.f32.mrb[0].mxu0
        %v850 = vadd.f32 0.0, %v849
        %v851 = vpop.f32.mrb[0].mxu0
        %v852 = vadd.f32 0.0, %v851
        %853 = vdwg.mxu0
        %v854 = vadd.f32 %v770, %v850
        %v855 = vadd.f32 %v771, %v852
        %856 = vrot.lane.b32.xlu0 %v348, 127
        %v857 = vpop.permute.xlu0 %856
        %858 = vrot.lane.b32.xlu0 %v349, 127
        %v859 = vpop.permute.xlu0 %858
        %vm860 = vcmp.lt.s32.totalorder %v355, 127
        %v861 = vsel %vm860, %v857, %v859
        %v862 = vsel %vm860, %v859, %v857
        %s863 = scalar_lea.vmem %s3, 10
        %v864 = vld [vmem:[%s863] sm:$0x3]
        %v866 = vlaneseq
        %v867 = vshrl.u32 %v866, 7
        %v868 = vsub.s32 0, %v867
        %v869 = vrot.slane %v864, %v868
        %v870 = vlaneseq
        %v871 = vshrl.u32 %v870, 7
        %v872 = vsub.s32 1, %v871
        %v873 = vrot.slane %v864, %v872
        %v876 = vmul.f32 %v861, %v869
        %v877 = vmul.f32 %v862, %v873
        %s878 = scalar_lea.vmem %s2, 20
        %v879 = vld [vmem:[%s878] sm:$0xf]
        %v881 = vsel %vm398, %v879, 0
        %v884 = vsel %vm402, %v876, 0
        %v887 = vsel %vm402, %v877, 0
        %889 = vmatprep.subr.mxu0 %v887
        %890 = vmatpush1.msra.mxu0 %v884
        %891 = vmatprep.subr.mxu0 0.0
        %892 = vmatpush1.msra.mxu0 0.0
        %893 = vmatprep.subr.mxu0 0.0
        %894 = vmatpush1.msra.mxu0 0.0
        %895 = vmatprep.subr.mxu0 0.0
        %896 = vmatpush1.msra.mxu0 0.0
        %897 = vmatprep.subr.mxu0 0.0
        %898 = vmatpush1.msra.mxu0 0.0
        %899 = vmatprep.subr.mxu0 0.0
        %900 = vmatpush1.msra.mxu0 0.0
        %901 = vmatprep.subr.mxu0 0.0
        %902 = vmatpush1.msra.mxu0 0.0
        %903 = vmatprep.subr.mxu0 0.0
        %904 = vmatpush1.msra.mxu0 0.0
        %905 = vmatprep.subr.mxu0 0.0
        %906 = vmatpush1.msra.mxu0 0.0
        %907 = vmatprep.subr.mxu0 0.0
        %908 = vmatpush1.msra.mxu0 0.0
        %909 = vmatprep.subr.mxu0 0.0
        %910 = vmatpush1.msra.mxu0 0.0
        %911 = vmatprep.subr.mxu0 0.0
        %912 = vmatpush1.msra.mxu0 0.0
        %913 = vmatprep.subr.mxu0 0.0
        %914 = vmatpush1.msra.mxu0 0.0
        %915 = vmatprep.subr.mxu0 0.0
        %916 = vmatpush1.msra.mxu0 0.0
        %917 = vmatprep.subr.mxu0 0.0
        %918 = vmatpush1.msra.mxu0 0.0
        %919 = vmatprep.subr.mxu0 0.0
        %920 = vmatpush1.msra.mxu0 0.0
        %921 = vmatprep.subr.mxu0 0.0
        %922 = vmatpush1.msra.mxu0 0.0
        %923 = vmatprep.subr.mxu0 0.0
        %924 = vmatpush1.msra.mxu0 0.0
        %925 = vmatprep.subr.mxu0 0.0
        %926 = vmatpush1.msra.mxu0 0.0
        %927 = vmatprep.subr.mxu0 0.0
        %928 = vmatpush1.msra.mxu0 0.0
        %929 = vmatprep.subr.mxu0 0.0
        %930 = vmatpush1.msra.mxu0 0.0
        %931 = vmatprep.subr.mxu0 0.0
        %932 = vmatpush1.msra.mxu0 0.0
        %933 = vmatprep.subr.mxu0 0.0
        %934 = vmatpush1.msra.mxu0 0.0
        %935 = vmatprep.subr.mxu0 0.0
        %936 = vmatpush1.msra.mxu0 0.0
        %937 = vmatprep.subr.mxu0 0.0
        %938 = vmatpush1.msra.mxu0 0.0
        %939 = vmatprep.subr.mxu0 0.0
        %940 = vmatpush1.msra.mxu0 0.0
        %941 = vmatprep.subr.mxu0 0.0
        %942 = vmatpush1.msra.mxu0 0.0
        %943 = vmatprep.subr.mxu0 0.0
        %944 = vmatpush1.msra.mxu0 0.0
        %945 = vmatprep.subr.mxu0 0.0
        %946 = vmatpush1.msra.mxu0 0.0
        %947 = vmatprep.subr.mxu0 0.0
        %948 = vmatpush1.msra.mxu0 0.0
        %949 = vmatprep.subr.mxu0 0.0
        %950 = vmatpush1.msra.mxu0 0.0
        %951 = vmatprep.subr.mxu0 0.0
        %952 = vmatpush1.msra.mxu0 0.0
        %953 = vmatprep.mubr.f32.mxu0 0.0
        %954 = vmatmul.mubr.f32.gmra.mrb[0].mxu0 %v881
        %v955 = vpop.f32.mrb[0].mxu0
        %v956 = vadd.f32 0.0, %v955
        %v957 = vpop.f32.mrb[0].mxu0
        %v958 = vadd.f32 0.0, %v957
        %959 = vdwg.mxu0
        %v960 = vadd.f32 %v854, %v956
        %v961 = vadd.f32 %v855, %v958
        %962 = vrot.lane.b32.xlu0 %v348, 113
        %v963 = vpop.permute.xlu0 %962
        %964 = vrot.lane.b32.xlu0 %v349, 113
        %v965 = vpop.permute.xlu0 %964
        %vm966 = vcmp.lt.s32.totalorder %v355, 113
        %v967 = vsel %vm966, %v963, %v965
        %v968 = vsel %vm966, %v965, %v963
        %s969 = scalar_lea.vmem %s3, 12
        %v970 = vld [vmem:[%s969] sm:$0x3]
        %v972 = vlaneseq
        %v973 = vshrl.u32 %v972, 7
        %v974 = vsub.s32 0, %v973
        %v975 = vrot.slane %v970, %v974
        %v976 = vlaneseq
        %v977 = vshrl.u32 %v976, 7
        %v978 = vsub.s32 1, %v977
        %v979 = vrot.slane %v970, %v978
        %v982 = vmul.f32 %v967, %v975
        %v983 = vmul.f32 %v968, %v979
        %s984 = scalar_lea.vmem %s2, 24
        %v985 = vld [vmem:[%s984] sm:$0xf]
        %v987 = vsel %vm398, %v985, 0
        %v990 = vsel %vm402, %v982, 0
        %v993 = vsel %vm402, %v983, 0
        %995 = vmatprep.subr.mxu0 %v993
        %996 = vmatpush1.msra.mxu0 %v990
        %997 = vmatprep.subr.mxu0 0.0
        %998 = vmatpush1.msra.mxu0 0.0
        %999 = vmatprep.subr.mxu0 0.0
        %1000 = vmatpush1.msra.mxu0 0.0
        %1001 = vmatprep.subr.mxu0 0.0
        %1002 = vmatpush1.msra.mxu0 0.0
        %1003 = vmatprep.subr.mxu0 0.0
        %1004 = vmatpush1.msra.mxu0 0.0
        %1005 = vmatprep.subr.mxu0 0.0
        %1006 = vmatpush1.msra.mxu0 0.0
        %1007 = vmatprep.subr.mxu0 0.0
        %1008 = vmatpush1.msra.mxu0 0.0
        %1009 = vmatprep.subr.mxu0 0.0
        %1010 = vmatpush1.msra.mxu0 0.0
        %1011 = vmatprep.subr.mxu0 0.0
        %1012 = vmatpush1.msra.mxu0 0.0
        %1013 = vmatprep.subr.mxu0 0.0
        %1014 = vmatpush1.msra.mxu0 0.0
        %1015 = vmatprep.subr.mxu0 0.0
        %1016 = vmatpush1.msra.mxu0 0.0
        %1017 = vmatprep.subr.mxu0 0.0
        %1018 = vmatpush1.msra.mxu0 0.0
        %1019 = vmatprep.subr.mxu0 0.0
        %1020 = vmatpush1.msra.mxu0 0.0
        %1021 = vmatprep.subr.mxu0 0.0
        %1022 = vmatpush1.msra.mxu0 0.0
        %1023 = vmatprep.subr.mxu0 0.0
        %1024 = vmatpush1.msra.mxu0 0.0
        %1025 = vmatprep.subr.mxu0 0.0
        %1026 = vmatpush1.msra.mxu0 0.0
        %1027 = vmatprep.subr.mxu0 0.0
        %1028 = vmatpush1.msra.mxu0 0.0
        %1029 = vmatprep.subr.mxu0 0.0
        %1030 = vmatpush1.msra.mxu0 0.0
        %1031 = vmatprep.subr.mxu0 0.0
        %1032 = vmatpush1.msra.mxu0 0.0
        %1033 = vmatprep.subr.mxu0 0.0
        %1034 = vmatpush1.msra.mxu0 0.0
        %1035 = vmatprep.subr.mxu0 0.0
        %1036 = vmatpush1.msra.mxu0 0.0
        %1037 = vmatprep.subr.mxu0 0.0
        %1038 = vmatpush1.msra.mxu0 0.0
        %1039 = vmatprep.subr.mxu0 0.0
        %1040 = vmatpush1.msra.mxu0 0.0
        %1041 = vmatprep.subr.mxu0 0.0
        %1042 = vmatpush1.msra.mxu0 0.0
        %1043 = vmatprep.subr.mxu0 0.0
        %1044 = vmatpush1.msra.mxu0 0.0
        %1045 = vmatprep.subr.mxu0 0.0
        %1046 = vmatpush1.msra.mxu0 0.0
        %1047 = vmatprep.subr.mxu0 0.0
        %1048 = vmatpush1.msra.mxu0 0.0
        %1049 = vmatprep.subr.mxu0 0.0
        %1050 = vmatpush1.msra.mxu0 0.0
        %1051 = vmatprep.subr.mxu0 0.0
        %1052 = vmatpush1.msra.mxu0 0.0
        %1053 = vmatprep.subr.mxu0 0.0
        %1054 = vmatpush1.msra.mxu0 0.0
        %1055 = vmatprep.subr.mxu0 0.0
        %1056 = vmatpush1.msra.mxu0 0.0
        %1057 = vmatprep.subr.mxu0 0.0
        %1058 = vmatpush1.msra.mxu0 0.0
        %1059 = vmatprep.mubr.f32.mxu0 0.0
        %1060 = vmatmul.mubr.f32.gmra.mrb[0].mxu0 %v987
        %v1061 = vpop.f32.mrb[0].mxu0
        %v1062 = vadd.f32 0.0, %v1061
        %v1063 = vpop.f32.mrb[0].mxu0
        %v1064 = vadd.f32 0.0, %v1063
        %1065 = vdwg.mxu0
        %v1066 = vadd.f32 %v960, %v1062
        %v1067 = vadd.f32 %v961, %v1064
        %1068 = vrot.lane.b32.xlu0 %v348, 112
        %v1069 = vpop.permute.xlu0 %1068
        %1070 = vrot.lane.b32.xlu0 %v349, 112
        %v1071 = vpop.permute.xlu0 %1070
        %vm1072 = vcmp.lt.s32.totalorder %v355, 112
        %v1073 = vsel %vm1072, %v1069, %v1071
        %v1074 = vsel %vm1072, %v1071, %v1069
        %s1075 = scalar_lea.vmem %s3, 14
        %v1076 = vld [vmem:[%s1075] sm:$0x3]
        %v1078 = vlaneseq
        %v1079 = vshrl.u32 %v1078, 7
        %v1080 = vsub.s32 0, %v1079
        %v1081 = vrot.slane %v1076, %v1080
        %v1082 = vlaneseq
        %v1083 = vshrl.u32 %v1082, 7
        %v1084 = vsub.s32 1, %v1083
        %v1085 = vrot.slane %v1076, %v1084
        %v1088 = vmul.f32 %v1073, %v1081
        %v1089 = vmul.f32 %v1074, %v1085
        %s1090 = scalar_lea.vmem %s2, 28
        %v1091 = vld [vmem:[%s1090] sm:$0xf]
        %v1093 = vsel %vm398, %v1091, 0
        %v1096 = vsel %vm402, %v1088, 0
        %v1099 = vsel %vm402, %v1089, 0
        %1101 = vmatprep.subr.mxu0 %v1099
        %1102 = vmatpush1.msra.mxu0 %v1096
        %1103 = vmatprep.subr.mxu0 0.0
        %1104 = vmatpush1.msra.mxu0 0.0
        %1105 = vmatprep.subr.mxu0 0.0
        %1106 = vmatpush1.msra.mxu0 0.0
        %1107 = vmatprep.subr.mxu0 0.0
        %1108 = vmatpush1.msra.mxu0 0.0
        %1109 = vmatprep.subr.mxu0 0.0
        %1110 = vmatpush1.msra.mxu0 0.0
        %1111 = vmatprep.subr.mxu0 0.0
        %1112 = vmatpush1.msra.mxu0 0.0
        %1113 = vmatprep.subr.mxu0 0.0
        %1114 = vmatpush1.msra.mxu0 0.0
        %1115 = vmatprep.subr.mxu0 0.0
        %1116 = vmatpush1.msra.mxu0 0.0
        %1117 = vmatprep.subr.mxu0 0.0
        %1118 = vmatpush1.msra.mxu0 0.0
        %1119 = vmatprep.subr.mxu0 0.0
        %1120 = vmatpush1.msra.mxu0 0.0
        %1121 = vmatprep.subr.mxu0 0.0
        %1122 = vmatpush1.msra.mxu0 0.0
        %1123 = vmatprep.subr.mxu0 0.0
        %1124 = vmatpush1.msra.mxu0 0.0
        %1125 = vmatprep.subr.mxu0 0.0
        %1126 = vmatpush1.msra.mxu0 0.0
        %1127 = vmatprep.subr.mxu0 0.0
        %1128 = vmatpush1.msra.mxu0 0.0
        %1129 = vmatprep.subr.mxu0 0.0
        %1130 = vmatpush1.msra.mxu0 0.0
        %1131 = vmatprep.subr.mxu0 0.0
        %1132 = vmatpush1.msra.mxu0 0.0
        %1133 = vmatprep.subr.mxu0 0.0
        %1134 = vmatpush1.msra.mxu0 0.0
        %1135 = vmatprep.subr.mxu0 0.0
        %1136 = vmatpush1.msra.mxu0 0.0
        %1137 = vmatprep.subr.mxu0 0.0
        %1138 = vmatpush1.msra.mxu0 0.0
        %1139 = vmatprep.subr.mxu0 0.0
        %1140 = vmatpush1.msra.mxu0 0.0
        %1141 = vmatprep.subr.mxu0 0.0
        %1142 = vmatpush1.msra.mxu0 0.0
        %1143 = vmatprep.subr.mxu0 0.0
        %1144 = vmatpush1.msra.mxu0 0.0
        %1145 = vmatprep.subr.mxu0 0.0
        %1146 = vmatpush1.msra.mxu0 0.0
        %1147 = vmatprep.subr.mxu0 0.0
        %1148 = vmatpush1.msra.mxu0 0.0
        %1149 = vmatprep.subr.mxu0 0.0
        %1150 = vmatpush1.msra.mxu0 0.0
        %1151 = vmatprep.subr.mxu0 0.0
        %1152 = vmatpush1.msra.mxu0 0.0
        %1153 = vmatprep.subr.mxu0 0.0
        %1154 = vmatpush1.msra.mxu0 0.0
        %1155 = vmatprep.subr.mxu0 0.0
        %1156 = vmatpush1.msra.mxu0 0.0
        %1157 = vmatprep.subr.mxu0 0.0
        %1158 = vmatpush1.msra.mxu0 0.0
        %1159 = vmatprep.subr.mxu0 0.0
        %1160 = vmatpush1.msra.mxu0 0.0
        %1161 = vmatprep.subr.mxu0 0.0
        %1162 = vmatpush1.msra.mxu0 0.0
        %1163 = vmatprep.subr.mxu0 0.0
        %1164 = vmatpush1.msra.mxu0 0.0
        %1165 = vmatprep.mubr.f32.mxu0 0.0
        %1166 = vmatmul.mubr.f32.gmra.mrb[0].mxu0 %v1093
        %v1167 = vpop.f32.mrb[0].mxu0
        %v1168 = vadd.f32 0.0, %v1167
        %v1169 = vpop.f32.mrb[0].mxu0
        %v1170 = vadd.f32 0.0, %v1169
        %1171 = vdwg.mxu0
        %v1172 = vadd.f32 %v1066, %v1168
        %v1173 = vadd.f32 %v1067, %v1170
        %1174 = vrot.lane.b32.xlu0 %v348, 111
        %v1175 = vpop.permute.xlu0 %1174
        %1176 = vrot.lane.b32.xlu0 %v349, 111
        %v1177 = vpop.permute.xlu0 %1176
        %vm1178 = vcmp.lt.s32.totalorder %v355, 111
        %v1179 = vsel %vm1178, %v1175, %v1177
        %v1180 = vsel %vm1178, %v1177, %v1175
        %s1181 = scalar_lea.vmem %s3, 16
        %v1182 = vld [vmem:[%s1181] sm:$0x3]
        %v1184 = vlaneseq
        %v1185 = vshrl.u32 %v1184, 7
        %v1186 = vsub.s32 0, %v1185
        %v1187 = vrot.slane %v1182, %v1186
        %v1188 = vlaneseq
        %v1189 = vshrl.u32 %v1188, 7
        %v1190 = vsub.s32 1, %v1189
        %v1191 = vrot.slane %v1182, %v1190
        %v1194 = vmul.f32 %v1179, %v1187
        %v1195 = vmul.f32 %v1180, %v1191
        %s1196 = scalar_lea.vmem %s2, 32
        %v1197 = vld [vmem:[%s1196] sm:$0xf]
        %v1199 = vsel %vm398, %v1197, 0
        %v1202 = vsel %vm402, %v1194, 0
        %v1205 = vsel %vm402, %v1195, 0
        %1207 = vmatprep.subr.mxu0 %v1205
        %1208 = vmatpush1.msra.mxu0 %v1202
        %1209 = vmatprep.subr.mxu0 0.0
        %1210 = vmatpush1.msra.mxu0 0.0
        %1211 = vmatprep.subr.mxu0 0.0
        %1212 = vmatpush1.msra.mxu0 0.0
        %1213 = vmatprep.subr.mxu0 0.0
        %1214 = vmatpush1.msra.mxu0 0.0
        %1215 = vmatprep.subr.mxu0 0.0
        %1216 = vmatpush1.msra.mxu0 0.0
        %1217 = vmatprep.subr.mxu0 0.0
        %1218 = vmatpush1.msra.mxu0 0.0
        %1219 = vmatprep.subr.mxu0 0.0
        %1220 = vmatpush1.msra.mxu0 0.0
        %1221 = vmatprep.subr.mxu0 0.0
        %1222 = vmatpush1.msra.mxu0 0.0
        %1223 = vmatprep.subr.mxu0 0.0
        %1224 = vmatpush1.msra.mxu0 0.0
        %1225 = vmatprep.subr.mxu0 0.0
        %1226 = vmatpush1.msra.mxu0 0.0
        %1227 = vmatprep.subr.mxu0 0.0
        %1228 = vmatpush1.msra.mxu0 0.0
        %1229 = vmatprep.subr.mxu0 0.0
        %1230 = vmatpush1.msra.mxu0 0.0
        %1231 = vmatprep.subr.mxu0 0.0
        %1232 = vmatpush1.msra.mxu0 0.0
        %1233 = vmatprep.subr.mxu0 0.0
        %1234 = vmatpush1.msra.mxu0 0.0
        %1235 = vmatprep.subr.mxu0 0.0
        %1236 = vmatpush1.msra.mxu0 0.0
        %1237 = vmatprep.subr.mxu0 0.0
        %1238 = vmatpush1.msra.mxu0 0.0
        %1239 = vmatprep.subr.mxu0 0.0
        %1240 = vmatpush1.msra.mxu0 0.0
        %1241 = vmatprep.subr.mxu0 0.0
        %1242 = vmatpush1.msra.mxu0 0.0
        %1243 = vmatprep.subr.mxu0 0.0
        %1244 = vmatpush1.msra.mxu0 0.0
        %1245 = vmatprep.subr.mxu0 0.0
        %1246 = vmatpush1.msra.mxu0 0.0
        %1247 = vmatprep.subr.mxu0 0.0
        %1248 = vmatpush1.msra.mxu0 0.0
        %1249 = vmatprep.subr.mxu0 0.0
        %1250 = vmatpush1.msra.mxu0 0.0
        %1251 = vmatprep.subr.mxu0 0.0
        %1252 = vmatpush1.msra.mxu0 0.0
        %1253 = vmatprep.subr.mxu0 0.0
        %1254 = vmatpush1.msra.mxu0 0.0
        %1255 = vmatprep.subr.mxu0 0.0
        %1256 = vmatpush1.msra.mxu0 0.0
        %1257 = vmatprep.subr.mxu0 0.0
        %1258 = vmatpush1.msra.mxu0 0.0
        %1259 = vmatprep.subr.mxu0 0.0
        %1260 = vmatpush1.msra.mxu0 0.0
        %1261 = vmatprep.subr.mxu0 0.0
        %1262 = vmatpush1.msra.mxu0 0.0
        %1263 = vmatprep.subr.mxu0 0.0
        %1264 = vmatpush1.msra.mxu0 0.0
        %1265 = vmatprep.subr.mxu0 0.0
        %1266 = vmatpush1.msra.mxu0 0.0
        %1267 = vmatprep.subr.mxu0 0.0
        %1268 = vmatpush1.msra.mxu0 0.0
        %1269 = vmatprep.subr.mxu0 0.0
        %1270 = vmatpush1.msra.mxu0 0.0
        %1271 = vmatprep.mubr.f32.mxu0 0.0
        %1272 = vmatmul.mubr.f32.gmra.mrb[0].mxu0 %v1199
        %v1273 = vpop.f32.mrb[0].mxu0
        %v1274 = vadd.f32 0.0, %v1273
        %v1275 = vpop.f32.mrb[0].mxu0
        %v1276 = vadd.f32 0.0, %v1275
        %1277 = vdwg.mxu0
        %v1278 = vadd.f32 %v1172, %v1274
        %v1279 = vadd.f32 %v1173, %v1276
        %v1282 = vcombine.low %v1278, %v1279
        %1284 = vst [vmem:[%s301] sm:$0xff] %v1282
        %s1285 = sand.u32 %s191, 1
        %s1286 = scalar_lea.sflag [#allocation3], %s1285
        %s1287 = sand.u32 %s191, 1
        %s1288 = smul.addr %s1287, 8
        %s1289 = scalar_lea.vmem [#allocation2], %s1288
        // Predicated region
        $region49: #{tpu_custom_call.1} parent=47 // pred_check
          %p1290 = pneg %p201
        $region50: #{tpu_custom_call.1} parent=47 // pred_check_branch
          %1292 = sbr.rel (%p1290) target = $region52
        $region51: #{tpu_custom_call.1} parent=47 // pred_region
          %s1294 = ssub.s32 128, 128
          %1295 = vsyncadd %s1286, %s1294
          %s1296 = smul.addr %s21, 2
          %s1297 = smul.addr %s1296, 64
          %s1298 = scalar_lea.hbm %s7, %s1297
          %s1300 = sshll.u32 %s1289, 4
          %s1301 = int_to_ptr.vmem [resolvable:$true] %s1300
          %1303 = dma.vmem_to_hbm [thread:$0]  %s1301, 128, %s1298, %s1286
        $region52: #{tpu_custom_call.1} parent=47 // pred_fallthru
          _
      $region48: #{tpu_custom_call.1} parent=5 // pred_fallthru
        _
      %p1304 = scmp.le.s32.totalorder 2, %s16
      // Predicated region
      $region53: #{tpu_custom_call.1} parent=5 // pred_check
        %p1305 = pneg %p1304
      $region54: #{tpu_custom_call.1} parent=5 // pred_check_branch
        %1307 = sbr.rel (%p1305) target = $region56
      $region55: #{tpu_custom_call.1} parent=5 // pred_region
        %s1308 = ssub.s32 %s16, 2
        // Predicated region
        $region57: #{tpu_custom_call.1} parent=55 // pred_check
          %p1309 = pneg %p207
        $region58: #{tpu_custom_call.1} parent=55 // pred_check_branch
          %1311 = sbr.rel (%p1309) target = $region60
        $region59: #{tpu_custom_call.1} parent=55 // pred_region
          %s1312 = sand.u32 %s192, 1
          %s1313 = scalar_lea.sflag [#allocation3], %s1312
          %s1314 = sand.u32 %s192, 1
          %s1315 = smul.addr %s1314, 8
          %s1316 = scalar_lea.vmem [#allocation2], %s1315
          %1317 = dma.done %s1313, 128
        $region60: #{tpu_custom_call.1} parent=55 // pred_fallthru
          _
      $region56: #{tpu_custom_call.1} parent=5 // pred_fallthru
        _
    $region6: #{tpu_custom_call.1} parent=1 // loop_footer
      %s20 = sadd.s32 1, %s16
    $region7: #{tpu_custom_call.1} parent=1 // loop_footer_branch
      %15 = sbr.rel target = $region3
    $region8: #{tpu_custom_call.1} parent=1 // loop_exit
      _
    %1318 = vsyncpa [#allocation3], 1
    %s1319 = scalar_lea.sflag [#allocation3], 1
    %1320 = vsyncpa %s1319, 1

</llo_original>
